<compile_context>
chip_gen: v6e
topology: v6e:2x2x1
jax: 0.10.0
libtpu: 0.0.40
codegen_flags: <defaults>
</compile_context>

<pallas_src>
import functools
import math

import jax
import jax.numpy as jnp
from jax.experimental import pallas as pl
from jax.experimental.pallas import tpu as pltpu


def _round_up(x, m):
    return (x + m - 1) // m * m


def _device_defaults():
    """(gate-activation dtype, max batch tile) chosen per TPU generation."""
    try:
        kind = jax.devices()[0].device_kind.lower()
    except Exception:  # pragma: no cover - non-TPU fallback
        kind = ""
    is_v5 = "v5" in kind
    # v5e: no bf16 VPU/EUP -> keep gate math f32; 4x128^2 MXU -> smaller tile.
    act_dtype = jnp.float32 if is_v5 else jnp.bfloat16
    max_batch_tile = 128 if is_v5 else 256
    return act_dtype, max_batch_tile


# -----------------------------------------------------------------------------
# Kernel
# -----------------------------------------------------------------------------
def adaptive_lstm_kernel(xh_ref, c_ref, w_ref, b_ref,
                         h_out_ref, c_out_ref, s_out_ref, *, act_dtype):
    """One batch tile of the AdaptiveLSTMCell forward.

    xh_ref : (TB, Ip+Hp)    bf16   [x | h] concatenated along features
    c_ref  : (TB, Hp)       f32
    w_ref  : (Ip+Hp, 5*Hp)  bf16   [w_ih^T ; w_hh^T] (lane-aligned gate blocks)
    b_ref  : (1, 5*Hp)      f32    b_ih + b_hh
    h_out  : (TB, Hp)       bf16
    c_out  : (TB, Hp)       f32
    s_out  : (TB, Hp)       bf16
    """
    # Single fused MXU matmul, bf16 operands, f32 accumulation.
    gates = jnp.dot(xh_ref[...], w_ref[...], preferred_element_type=jnp.float32)
    gates = gates + b_ref[...]                      # single fused bias add

    Hp = h_out_ref.shape[1]
    act = gates.astype(act_dtype)                   # bf16 EUP on v6e/v7x, f32 on v5e

    half = jnp.asarray(0.5, act_dtype)

    def sig(x):
        # sigmoid(x) = 0.5*tanh(0.5*x) + 0.5 : one EUP push instead of exp+recip.
        return half * jnp.tanh(half * x) + half

    # Hp is a multiple of 128 -> each gate slice is a lane-aligned view.
    ingate     = sig(act[:, 0 * Hp:1 * Hp]).astype(jnp.float32)
    forgetgate = sig(act[:, 1 * Hp:2 * Hp]).astype(jnp.float32)
    cellgate   = jnp.tanh(act[:, 2 * Hp:3 * Hp]).astype(jnp.float32)
    outgate    = sig(act[:, 3 * Hp:4 * Hp])
    sgate      = sig(act[:, 4 * Hp:5 * Hp])

    # Cell-state arithmetic stays in f32 on every chip.
    c_new  = forgetgate * c_ref[...] + ingate * cellgate
    tanh_c = jnp.tanh(c_new.astype(act_dtype))

    h_out_ref[...] = (outgate * tanh_c).astype(h_out_ref.dtype)
    c_out_ref[...] = c_new
    s_out_ref[...] = (sgate * tanh_c).astype(s_out_ref.dtype)


# -----------------------------------------------------------------------------
# One-time parameter repack (do NOT call per step)
# -----------------------------------------------------------------------------
def prepare_adaptive_lstm_params(w_ih, w_hh, b_ih, b_hh,
                                 param_dtype=jnp.bfloat16):
    """Repack PyTorch-layout params into kernel layout, once at init time.

    w_ih: (5H, I), w_hh: (5H, H), b_*: (5H,)  (gate order = torch.chunk(5, 1)).
    Returns dict with:
      w   : (Ip+Hp, 5*Hp)  param_dtype  fused [w_ih^T ; w_hh^T], I/H padded to 128
      bias: (1, 5*Hp)      float32      b_ih + b_hh
    """
    fiveH, I = w_ih.shape
    H = fiveH // 5
    assert fiveH == 5 * H and w_hh.shape == (5 * H, H)
    assert b_ih.shape == (5 * H,) and b_hh.shape == (5 * H,)
    Ip, Hp = _round_up(I, 128), _round_up(H, 128)

    def repack(wmat, k_in, kp_in):
        # (5H, K) -> (5, H, K) -> pad -> (5, Hp, Kp) -> (Kp, 5, Hp) -> (Kp, 5*Hp)
        w5 = wmat.reshape(5, H, k_in)
        w5 = jnp.pad(w5, ((0, 0), (0, Hp - H), (0, kp_in - k_in)))
        return jnp.transpose(w5, (2, 0, 1)).reshape(kp_in, 5 * Hp)

    # Fused weight: xh @ w == x @ w_ih^T + h @ w_hh^T (K = Ip+Hp fills the MXU).
    w = jnp.concatenate([repack(w_ih, I, Ip), repack(w_hh, H, Hp)],
                        axis=0).astype(param_dtype)

    bias = (b_ih + b_hh).astype(jnp.float32).reshape(5, H)
    bias = jnp.pad(bias, ((0, 0), (0, Hp - H))).reshape(1, 5 * Hp)

    return dict(w=w, bias=bias, input_size=I, hidden_size=H,
                padded_input_size=Ip, padded_hidden_size=Hp)


# -----------------------------------------------------------------------------
# Cell wrapper
# -----------------------------------------------------------------------------
def adaptive_lstm_cell(inp, ht, ct, params, *, max_batch_tile=None,
                       act_dtype=None, hs_out_dtype=jnp.bfloat16,
                       interpret=False):
    """inp: (B, I), ht/ct: (B, H); params from prepare_adaptive_lstm_params.

    Returns (h_new, c_new, s_new): h/s in hs_out_dtype (bf16 default), c in f32.
    """
    w, bias = params["w"], params["bias"]
    I, H = params["input_size"], params["hidden_size"]
    Ip, Hp = params["padded_input_size"], params["padded_hidden_size"]
    Kp = Ip + Hp
    assert w.shape == (Kp, 5 * Hp) and bias.shape == (1, 5 * Hp)
    compute_dtype = w.dtype

    d_act, d_tile = _device_defaults()
    act_dtype = d_act if act_dtype is None else act_dtype
    max_batch_tile = d_tile if max_batch_tile is None else max_batch_tile

    B = inp.shape[0]
    # Balanced batch tiles, rounded to 16 rows (full bf16 sublane packing);
    # padding waste capped at <16 rows per tile.
    n_tiles = pl.cdiv(B, max_batch_tile)
    TB = _round_up(pl.cdiv(B, n_tiles), 16)
    Bp = n_tiles * TB
    # TODO(synk): on v7x prefer n_tiles >= 2 (or the N-split TODO above) so both
    # TensorCores get work once the batch is large enough to be compute-bound.

    # TODO(synk): when driven inside a scan, accept pre-padded bf16 [x|h] and a
    # pre-padded f32 c to avoid these per-step XLA pad/cast HBM copies.
    xh = jnp.concatenate(
        [jnp.pad(inp.astype(compute_dtype), ((0, Bp - B), (0, Ip - I))),
         jnp.pad(ht.astype(compute_dtype), ((0, Bp - B), (0, Hp - H)))],
        axis=1)
    c = jnp.pad(ct.astype(jnp.float32), ((0, Bp - B), (0, Hp - H)))

    kernel = functools.partial(adaptive_lstm_kernel, act_dtype=act_dtype)

    out_shapes = (
        jax.ShapeDtypeStruct((Bp, Hp), hs_out_dtype),   # h_new
        jax.ShapeDtypeStruct((Bp, Hp), jnp.float32),    # c_new
        jax.ShapeDtypeStruct((Bp, Hp), hs_out_dtype),   # s_new
    )

    def build(single_buffered_weights):
        if single_buffered_weights:
            # Constant index_map -> no re-DMA needed; keep one buffer only.
            w_spec = pl.BlockSpec((Kp, 5 * Hp), lambda b: (0, 0),
                                  pipeline_mode=pl.Buffered(1))
            b_spec = pl.BlockSpec((1, 5 * Hp), lambda b: (0, 0),
                                  pipeline_mode=pl.Buffered(1))
            w_mult = 1
        else:
            w_spec = pl.BlockSpec((Kp, 5 * Hp), lambda b: (0, 0))
            b_spec = pl.BlockSpec((1, 5 * Hp), lambda b: (0, 0))
            w_mult = 2

        # VMEM accounting: weights (x1 or x2 per buffering), double-buffered
        # activations and outputs, f32 gates slab + gate temporaries, slack.
        itemsize = jnp.dtype(compute_dtype).itemsize
        hs_size = jnp.dtype(hs_out_dtype).itemsize
        weight_bytes = w_mult * (Kp * 5 * Hp * itemsize + 5 * Hp * 4)
        in_bytes = 2 * (TB * Kp * itemsize + TB * Hp * 4)
        out_bytes = 2 * TB * Hp * (2 * hs_size + 4)
        slab_bytes = TB * 5 * Hp * 4 + 6 * TB * Hp * 4
        vmem_need = weight_bytes + in_bytes + out_bytes + slab_bytes + (2 << 20)
        vmem_limit = int(min(max(vmem_need, 8 << 20), 48 << 20))

        return pl.pallas_call(
            kernel,
            out_shape=out_shapes,
            grid_spec=pltpu.PrefetchScalarGridSpec(
                num_scalar_prefetch=0,
                grid=(n_tiles,),
                in_specs=[
                    pl.BlockSpec((TB, Kp), lambda b: (b, 0)),   # [x|h] tile
                    pl.BlockSpec((TB, Hp), lambda b: (b, 0)),   # c tile
                    w_spec,                                     # fused weights
                    b_spec,                                     # bias
                ],
                out_specs=[
                    pl.BlockSpec((TB, Hp), lambda b: (b, 0)),
                    pl.BlockSpec((TB, Hp), lambda b: (b, 0)),
                    pl.BlockSpec((TB, Hp), lambda b: (b, 0)),
                ],
            ),
            compiler_params=pltpu.CompilerParams(
                dimension_semantics=("parallel",),
                vmem_limit_bytes=vmem_limit,
            ),
            interpret=interpret,
        )

    try:
        h_new, c_new, s_new = build(True)(xh, c, w, bias)
    except Exception:
        # pipeline_mode=pl.Buffered(1) unsupported on this jax build/backend:
        # fall back to default double-buffered resident weights.
        h_new, c_new, s_new = build(False)(xh, c, w, bias)

    return h_new[:B, :H], c_new[:B, :H], s_new[:B, :H]


# -----------------------------------------------------------------------------
# Pure-JAX reference (mirrors the PyTorch forward exactly, in f32)
# -----------------------------------------------------------------------------
def reference_adaptive_lstm_cell(inp, ht, ct, w_ih, w_hh, b_ih, b_hh):
    gates = inp @ w_ih.T + b_ih + ht @ w_hh.T + b_hh
    H = ht.shape[1]
    i, f, g, o, s = [gates[:, k * H:(k + 1) * H] for k in range(5)]
    i = jax.nn.sigmoid(i); f = jax.nn.sigmoid(f); g = jnp.tanh(g)
    o = jax.nn.sigmoid(o); s = jax.nn.sigmoid(s)
    c_new = f * ct + i * g
    return o * jnp.tanh(c_new), c_new, s * jnp.tanh(c_new)


if __name__ == "__main__":
    B, I, H = 2, 16, 32

    key = jax.random.PRNGKey(0)
    k_x, k_h, k_c, k_wih, k_whh = jax.random.split(key, 5)

    # Deterministic init mirroring AdaptiveLSTMCell.init_parameters:
    # weights ~ U(-stdv, stdv) with stdv = 1/sqrt(H); biases zero.
    stdv = 1.0 / math.sqrt(H)
    w_ih = jax.random.uniform(k_wih, (5 * H, I), jnp.float32, -stdv, stdv)
    w_hh = jax.random.uniform(k_whh, (5 * H, H), jnp.float32, -stdv, stdv)
    b_ih = jnp.zeros((5 * H,), jnp.float32)
    b_hh = jnp.zeros((5 * H,), jnp.float32)

    # Example inputs.
    inp = jax.random.normal(k_x, (B, I), jnp.float32)
    ht = jax.random.normal(k_h, (B, H), jnp.float32)
    ct = jax.random.normal(k_c, (B, H), jnp.float32)

    # One-time repack (fused + transposed bf16 weights, lane-aligned gates).
    params = prepare_adaptive_lstm_params(w_ih, w_hh, b_ih, b_hh)

    h_new, c_new, s_new = adaptive_lstm_cell(inp, ht, ct, params)
    jax.block_until_ready((h_new, c_new, s_new))

    h_ref, c_ref, s_ref = reference_adaptive_lstm_cell(
        inp, ht, ct, w_ih, w_hh, b_ih, b_hh)

    # bf16 MXU operands / bf16 gate activations & h,s outputs with f32 cell
    # state -> loosen tolerance vs the f32 reference.
    assert jnp.allclose(h_new.astype(jnp.float32), h_ref, atol=2e-2, rtol=2e-2)
    assert jnp.allclose(c_new.astype(jnp.float32), c_ref, atol=2e-2, rtol=2e-2)
    assert jnp.allclose(s_new.astype(jnp.float32), s_ref, atol=2e-2, rtol=2e-2)

    print("KERNEL_OK")
</pallas_src>

<mosaic_0001>
module attributes {stable_mosaic.version = 11 : i64} {
  func.func @adaptive_lstm_kernel(%arg0: i32, %arg1: memref<16x256xbf16, #tpu.memory_space<vmem>>, %arg2: memref<16x128xf32, #tpu.memory_space<vmem>>, %arg3: memref<256x640xbf16, #tpu.memory_space<vmem>>, %arg4: memref<1x640xf32, #tpu.memory_space<vmem>>, %arg5: memref<16x128xbf16, #tpu.memory_space<vmem>>, %arg6: memref<16x128xf32, #tpu.memory_space<vmem>>, %arg7: memref<16x128xbf16, #tpu.memory_space<vmem>>) attributes {dimension_semantics = [#tpu.dimension_semantics<parallel>], iteration_bounds = array<i64: 1>, scalar_prefetch = 0 : i64, scratch_operands = 0 : i64, tpu.core_type = #tpu.core_type<tc>, window_params = [{transform_indices = @transform_0, window_bounds = array<i64: 16, 256>}, {transform_indices = @transform_1, window_bounds = array<i64: 16, 128>}, {pipeline_mode = #tpu.pipeline_mode<synchronous>, transform_indices = @transform_2, window_bounds = array<i64: 256, 640>}, {pipeline_mode = #tpu.pipeline_mode<synchronous>, transform_indices = @transform_3, window_bounds = array<i64: 1, 640>}, {transform_indices = @transform_4, window_bounds = array<i64: 16, 128>}, {transform_indices = @transform_5, window_bounds = array<i64: 16, 128>}, {transform_indices = @transform_6, window_bounds = array<i64: 16, 128>}]} {
    %c0 = arith.constant 0 : index
    %c0_0 = arith.constant 0 : index
    %0 = vector.load %arg1[%c0, %c0_0] : memref<16x256xbf16, #tpu.memory_space<vmem>>, vector<16x256xbf16>
    %c0_1 = arith.constant 0 : index
    %c0_2 = arith.constant 0 : index
    %1 = vector.load %arg3[%c0_1, %c0_2] : memref<256x640xbf16, #tpu.memory_space<vmem>>, vector<256x640xbf16>
    %cst = arith.constant dense<0.000000e+00> : vector<16x640xf32>
    %2 = tpu.matmul %0, %1, %cst {dimension_numbers = #tpu.dot_dimension_numbers<[1], [0], [0], [1], [0, 0, 1, 1], [], []>} : vector<16x256xbf16>, vector<256x640xbf16>, vector<16x640xf32> -> vector<16x640xf32>
    %c0_3 = arith.constant 0 : index
    %c0_4 = arith.constant 0 : index
    %3 = vector.load %arg4[%c0_3, %c0_4] : memref<1x640xf32, #tpu.memory_space<vmem>>, vector<1x640xf32>
    %4 = vector.broadcast %3 : vector<1x640xf32> to vector<16x640xf32>
    %5 = arith.addf %2, %4 : vector<16x640xf32>
    %6 = arith.truncf %5 : vector<16x640xf32> to vector<16x640xbf16>
    %7 = vector.extract_strided_slice %6 {offsets = [0, 0], sizes = [16, 128], strides = [1, 1]} : vector<16x640xbf16> to vector<16x128xbf16>
    %cst_5 = arith.constant 5.000000e-01 : bf16
    %8 = vector.broadcast %cst_5 : bf16 to vector<16x128xbf16>
    %9 = arith.mulf %8, %7 : vector<16x128xbf16>
    %10 = math.tanh %9 : vector<16x128xbf16>
    %cst_6 = arith.constant 5.000000e-01 : bf16
    %11 = vector.broadcast %cst_6 : bf16 to vector<16x128xbf16>
    %12 = arith.mulf %11, %10 : vector<16x128xbf16>
    %cst_7 = arith.constant 5.000000e-01 : bf16
    %13 = vector.broadcast %cst_7 : bf16 to vector<16x128xbf16>
    %14 = arith.addf %12, %13 : vector<16x128xbf16>
    %15 = arith.extf %14 : vector<16x128xbf16> to vector<16x128xf32>
    %16 = vector.extract_strided_slice %6 {offsets = [0, 128], sizes = [16, 128], strides = [1, 1]} : vector<16x640xbf16> to vector<16x128xbf16>
    %cst_8 = arith.constant 5.000000e-01 : bf16
    %17 = vector.broadcast %cst_8 : bf16 to vector<16x128xbf16>
    %18 = arith.mulf %17, %16 : vector<16x128xbf16>
    %19 = math.tanh %18 : vector<16x128xbf16>
    %cst_9 = arith.constant 5.000000e-01 : bf16
    %20 = vector.broadcast %cst_9 : bf16 to vector<16x128xbf16>
    %21 = arith.mulf %20, %19 : vector<16x128xbf16>
    %cst_10 = arith.constant 5.000000e-01 : bf16
    %22 = vector.broadcast %cst_10 : bf16 to vector<16x128xbf16>
    %23 = arith.addf %21, %22 : vector<16x128xbf16>
    %24 = arith.extf %23 : vector<16x128xbf16> to vector<16x128xf32>
    %25 = vector.extract_strided_slice %6 {offsets = [0, 256], sizes = [16, 128], strides = [1, 1]} : vector<16x640xbf16> to vector<16x128xbf16>
    %26 = math.tanh %25 : vector<16x128xbf16>
    %27 = arith.extf %26 : vector<16x128xbf16> to vector<16x128xf32>
    %28 = vector.extract_strided_slice %6 {offsets = [0, 384], sizes = [16, 128], strides = [1, 1]} : vector<16x640xbf16> to vector<16x128xbf16>
    %cst_11 = arith.constant 5.000000e-01 : bf16
    %29 = vector.broadcast %cst_11 : bf16 to vector<16x128xbf16>
    %30 = arith.mulf %29, %28 : vector<16x128xbf16>
    %31 = math.tanh %30 : vector<16x128xbf16>
    %cst_12 = arith.constant 5.000000e-01 : bf16
    %32 = vector.broadcast %cst_12 : bf16 to vector<16x128xbf16>
    %33 = arith.mulf %32, %31 : vector<16x128xbf16>
    %cst_13 = arith.constant 5.000000e-01 : bf16
    %34 = vector.broadcast %cst_13 : bf16 to vector<16x128xbf16>
    %35 = arith.addf %33, %34 : vector<16x128xbf16>
    %36 = vector.extract_strided_slice %6 {offsets = [0, 512], sizes = [16, 128], strides = [1, 1]} : vector<16x640xbf16> to vector<16x128xbf16>
    %cst_14 = arith.constant 5.000000e-01 : bf16
    %37 = vector.broadcast %cst_14 : bf16 to vector<16x128xbf16>
    %38 = arith.mulf %37, %36 : vector<16x128xbf16>
    %39 = math.tanh %38 : vector<16x128xbf16>
    %cst_15 = arith.constant 5.000000e-01 : bf16
    %40 = vector.broadcast %cst_15 : bf16 to vector<16x128xbf16>
    %41 = arith.mulf %40, %39 : vector<16x128xbf16>
    %cst_16 = arith.constant 5.000000e-01 : bf16
    %42 = vector.broadcast %cst_16 : bf16 to vector<16x128xbf16>
    %43 = arith.addf %41, %42 : vector<16x128xbf16>
    %c0_17 = arith.constant 0 : index
    %c0_18 = arith.constant 0 : index
    %44 = vector.load %arg2[%c0_17, %c0_18] : memref<16x128xf32, #tpu.memory_space<vmem>>, vector<16x128xf32>
    %45 = arith.mulf %24, %44 : vector<16x128xf32>
    %46 = arith.mulf %15, %27 : vector<16x128xf32>
    %47 = arith.addf %45, %46 : vector<16x128xf32>
    %48 = arith.truncf %47 : vector<16x128xf32> to vector<16x128xbf16>
    %49 = math.tanh %48 : vector<16x128xbf16>
    %50 = arith.mulf %35, %49 : vector<16x128xbf16>
    %c0_19 = arith.constant 0 : index
    %c0_20 = arith.constant 0 : index
    %51 = vector.load %arg5[%c0_19, %c0_20] : memref<16x128xbf16, #tpu.memory_space<vmem>>, vector<16x128xbf16>
    tpu.vector_store %arg5[%c0_19, %c0_20], %50 {strides = array<i32>} : memref<16x128xbf16, #tpu.memory_space<vmem>>, vector<16x128xbf16>,
    %c0_21 = arith.constant 0 : index
    %c0_22 = arith.constant 0 : index
    %52 = vector.load %arg6[%c0_21, %c0_22] : memref<16x128xf32, #tpu.memory_space<vmem>>, vector<16x128xf32>
    tpu.vector_store %arg6[%c0_21, %c0_22], %47 {strides = array<i32>} : memref<16x128xf32, #tpu.memory_space<vmem>>, vector<16x128xf32>,
    %53 = arith.mulf %43, %49 : vector<16x128xbf16>
    %c0_23 = arith.constant 0 : index
    %c0_24 = arith.constant 0 : index
    %54 = vector.load %arg7[%c0_23, %c0_24] : memref<16x128xbf16, #tpu.memory_space<vmem>>, vector<16x128xbf16>
    tpu.vector_store %arg7[%c0_23, %c0_24], %53 {strides = array<i32>} : memref<16x128xbf16, #tpu.memory_space<vmem>>, vector<16x128xbf16>,
    return
  }
  func.func @transform_0(%arg0: i32) -> (i32, i32) {
    %c0_i32 = arith.constant 0 : i32
    %c0_i32_0 = arith.constant 0 : i32
    return %arg0, %c0_i32 : i32, i32
  }
  func.func @transform_1(%arg0: i32) -> (i32, i32) {
    %c0_i32 = arith.constant 0 : i32
    %c0_i32_0 = arith.constant 0 : i32
    return %arg0, %c0_i32 : i32, i32
  }
  func.func @transform_2(%arg0: i32) -> (i32, i32) {
    %c0_i32 = arith.constant 0 : i32
    %c0_i32_0 = arith.constant 0 : i32
    %c0_i32_1 = arith.constant 0 : i32
    return %c0_i32, %c0_i32_0 : i32, i32
  }
  func.func @transform_3(%arg0: i32) -> (i32, i32) {
    %c0_i32 = arith.constant 0 : i32
    %c0_i32_0 = arith.constant 0 : i32
    %c0_i32_1 = arith.constant 0 : i32
    return %c0_i32, %c0_i32_0 : i32, i32
  }
  func.func @transform_4(%arg0: i32) -> (i32, i32) {
    %c0_i32 = arith.constant 0 : i32
    %c0_i32_0 = arith.constant 0 : i32
    return %arg0, %c0_i32 : i32, i32
  }
  func.func @transform_5(%arg0: i32) -> (i32, i32) {
    %c0_i32 = arith.constant 0 : i32
    %c0_i32_0 = arith.constant 0 : i32
    return %arg0, %c0_i32 : i32, i32
  }
  func.func @transform_6(%arg0: i32) -> (i32, i32) {
    %c0_i32 = arith.constant 0 : i32
    %c0_i32_0 = arith.constant 0 : i32
    return %arg0, %c0_i32 : i32, i32
  }
}

module attributes {stable_mosaic.version = 11 : i64} {
  func.func @adaptive_lstm_kernel(%arg0: i32, %arg1: memref<16x256xbf16, #tpu.memory_space<vmem>>, %arg2: memref<16x128xf32, #tpu.memory_space<vmem>>, %arg3: memref<256x640xbf16, #tpu.memory_space<vmem>>, %arg4: memref<1x640xf32, #tpu.memory_space<vmem>>, %arg5: memref<16x128xbf16, #tpu.memory_space<vmem>>, %arg6: memref<16x128xf32, #tpu.memory_space<vmem>>, %arg7: memref<16x128xbf16, #tpu.memory_space<vmem>>) attributes {dimension_semantics = [#tpu.dimension_semantics<parallel>], iteration_bounds = array<i64: 1>, scalar_prefetch = 0 : i64, scratch_operands = 0 : i64, tpu.core_type = #tpu.core_type<tc>, window_params = [{transform_indices = @transform_0, window_bounds = array<i64: 16, 256>}, {transform_indices = @transform_1, window_bounds = array<i64: 16, 128>}, {pipeline_mode = #tpu.pipeline_mode<synchronous>, transform_indices = @transform_2, window_bounds = array<i64: 256, 640>}, {pipeline_mode = #tpu.pipeline_mode<synchronous>, transform_indices = @transform_3, window_bounds = array<i64: 1, 640>}, {transform_indices = @transform_4, window_bounds = array<i64: 16, 128>}, {transform_indices = @transform_5, window_bounds = array<i64: 16, 128>}, {transform_indices = @transform_6, window_bounds = array<i64: 16, 128>}]} {
    %c0 = arith.constant 0 : index
    %c0_0 = arith.constant 0 : index
    %0 = vector.load %arg1[%c0, %c0_0] : memref<16x256xbf16, #tpu.memory_space<vmem>>, vector<16x256xbf16>
    %c0_1 = arith.constant 0 : index
    %c0_2 = arith.constant 0 : index
    %1 = vector.load %arg3[%c0_1, %c0_2] : memref<256x640xbf16, #tpu.memory_space<vmem>>, vector<256x640xbf16>
    %cst = arith.constant dense<0.000000e+00> : vector<16x640xf32>
    %2 = tpu.matmul %0, %1, %cst {dimension_numbers = #tpu.dot_dimension_numbers<[1], [0], [0], [1], [0, 0, 1, 1], [], []>} : vector<16x256xbf16>, vector<256x640xbf16>, vector<16x640xf32> -> vector<16x640xf32>
    %c0_3 = arith.constant 0 : index
    %c0_4 = arith.constant 0 : index
    %3 = vector.load %arg4[%c0_3, %c0_4] : memref<1x640xf32, #tpu.memory_space<vmem>>, vector<1x640xf32>
    %4 = vector.broadcast %3 : vector<1x640xf32> to vector<16x640xf32>
    %5 = arith.addf %2, %4 : vector<16x640xf32>
    %6 = arith.truncf %5 : vector<16x640xf32> to vector<16x640xbf16>
    %7 = vector.extract_strided_slice %6 {offsets = [0, 0], sizes = [16, 128], strides = [1, 1]} : vector<16x640xbf16> to vector<16x128xbf16>
    %cst_5 = arith.constant 5.000000e-01 : bf16
    %8 = vector.broadcast %cst_5 : bf16 to vector<16x128xbf16>
    %9 = arith.mulf %8, %7 : vector<16x128xbf16>
    %10 = math.tanh %9 : vector<16x128xbf16>
    %cst_6 = arith.constant 5.000000e-01 : bf16
    %11 = vector.broadcast %cst_6 : bf16 to vector<16x128xbf16>
    %12 = arith.mulf %11, %10 : vector<16x128xbf16>
    %cst_7 = arith.constant 5.000000e-01 : bf16
    %13 = vector.broadcast %cst_7 : bf16 to vector<16x128xbf16>
    %14 = arith.addf %12, %13 : vector<16x128xbf16>
    %15 = arith.extf %14 : vector<16x128xbf16> to vector<16x128xf32>
    %16 = vector.extract_strided_slice %6 {offsets = [0, 128], sizes = [16, 128], strides = [1, 1]} : vector<16x640xbf16> to vector<16x128xbf16>
    %cst_8 = arith.constant 5.000000e-01 : bf16
    %17 = vector.broadcast %cst_8 : bf16 to vector<16x128xbf16>
    %18 = arith.mulf %17, %16 : vector<16x128xbf16>
    %19 = math.tanh %18 : vector<16x128xbf16>
    %cst_9 = arith.constant 5.000000e-01 : bf16
    %20 = vector.broadcast %cst_9 : bf16 to vector<16x128xbf16>
    %21 = arith.mulf %20, %19 : vector<16x128xbf16>
    %cst_10 = arith.constant 5.000000e-01 : bf16
    %22 = vector.broadcast %cst_10 : bf16 to vector<16x128xbf16>
    %23 = arith.addf %21, %22 : vector<16x128xbf16>
    %24 = arith.extf %23 : vector<16x128xbf16> to vector<16x128xf32>
    %25 = vector.extract_strided_slice %6 {offsets = [0, 256], sizes = [16, 128], strides = [1, 1]} : vector<16x640xbf16> to vector<16x128xbf16>
    %26 = math.tanh %25 : vector<16x128xbf16>
    %27 = arith.extf %26 : vector<16x128xbf16> to vector<16x128xf32>
    %28 = vector.extract_strided_slice %6 {offsets = [0, 384], sizes = [16, 128], strides = [1, 1]} : vector<16x640xbf16> to vector<16x128xbf16>
    %cst_11 = arith.constant 5.000000e-01 : bf16
    %29 = vector.broadcast %cst_11 : bf16 to vector<16x128xbf16>
    %30 = arith.mulf %29, %28 : vector<16x128xbf16>
    %31 = math.tanh %30 : vector<16x128xbf16>
    %cst_12 = arith.constant 5.000000e-01 : bf16
    %32 = vector.broadcast %cst_12 : bf16 to vector<16x128xbf16>
    %33 = arith.mulf %32, %31 : vector<16x128xbf16>
    %cst_13 = arith.constant 5.000000e-01 : bf16
    %34 = vector.broadcast %cst_13 : bf16 to vector<16x128xbf16>
    %35 = arith.addf %33, %34 : vector<16x128xbf16>
    %36 = vector.extract_strided_slice %6 {offsets = [0, 512], sizes = [16, 128], strides = [1, 1]} : vector<16x640xbf16> to vector<16x128xbf16>
    %cst_14 = arith.constant 5.000000e-01 : bf16
    %37 = vector.broadcast %cst_14 : bf16 to vector<16x128xbf16>
    %38 = arith.mulf %37, %36 : vector<16x128xbf16>
    %39 = math.tanh %38 : vector<16x128xbf16>
    %cst_15 = arith.constant 5.000000e-01 : bf16
    %40 = vector.broadcast %cst_15 : bf16 to vector<16x128xbf16>
    %41 = arith.mulf %40, %39 : vector<16x128xbf16>
    %cst_16 = arith.constant 5.000000e-01 : bf16
    %42 = vector.broadcast %cst_16 : bf16 to vector<16x128xbf16>
    %43 = arith.addf %41, %42 : vector<16x128xbf16>
    %c0_17 = arith.constant 0 : index
    %c0_18 = arith.constant 0 : index
    %44 = vector.load %arg2[%c0_17, %c0_18] : memref<16x128xf32, #tpu.memory_space<vmem>>, vector<16x128xf32>
    %45 = arith.mulf %24, %44 : vector<16x128xf32>
    %46 = arith.mulf %15, %27 : vector<16x128xf32>
    %47 = arith.addf %45, %46 : vector<16x128xf32>
    %48 = arith.truncf %47 : vector<16x128xf32> to vector<16x128xbf16>
    %49 = math.tanh %48 : vector<16x128xbf16>
    %50 = arith.mulf %35, %49 : vector<16x128xbf16>
    %c0_19 = arith.constant 0 : index
    %c0_20 = arith.constant 0 : index
    %51 = vector.load %arg5[%c0_19, %c0_20] : memref<16x128xbf16, #tpu.memory_space<vmem>>, vector<16x128xbf16>
    tpu.vector_store %arg5[%c0_19, %c0_20], %50 {strides = array<i32>} : memref<16x128xbf16, #tpu.memory_space<vmem>>, vector<16x128xbf16>,
    %c0_21 = arith.constant 0 : index
    %c0_22 = arith.constant 0 : index
    %52 = vector.load %arg6[%c0_21, %c0_22] : memref<16x128xf32, #tpu.memory_space<vmem>>, vector<16x128xf32>
    tpu.vector_store %arg6[%c0_21, %c0_22], %47 {strides = array<i32>} : memref<16x128xf32, #tpu.memory_space<vmem>>, vector<16x128xf32>,
    %53 = arith.mulf %43, %49 : vector<16x128xbf16>
    %c0_23 = arith.constant 0 : index
    %c0_24 = arith.constant 0 : index
    %54 = vector.load %arg7[%c0_23, %c0_24] : memref<16x128xbf16, #tpu.memory_space<vmem>>, vector<16x128xbf16>
    tpu.vector_store %arg7[%c0_23, %c0_24], %53 {strides = array<i32>} : memref<16x128xbf16, #tpu.memory_space<vmem>>, vector<16x128xbf16>,
    return
  }
  func.func @transform_0(%arg0: i32) -> (i32, i32) {
    %c0_i32 = arith.constant 0 : i32
    %c0_i32_0 = arith.constant 0 : i32
    return %arg0, %c0_i32 : i32, i32
  }
  func.func @transform_1(%arg0: i32) -> (i32, i32) {
    %c0_i32 = arith.constant 0 : i32
    %c0_i32_0 = arith.constant 0 : i32
    return %arg0, %c0_i32 : i32, i32
  }
  func.func @transform_2(%arg0: i32) -> (i32, i32) {
    %c0_i32 = arith.constant 0 : i32
    %c0_i32_0 = arith.constant 0 : i32
    %c0_i32_1 = arith.constant 0 : i32
    return %c0_i32, %c0_i32_0 : i32, i32
  }
  func.func @transform_3(%arg0: i32) -> (i32, i32) {
    %c0_i32 = arith.constant 0 : i32
    %c0_i32_0 = arith.constant 0 : i32
    %c0_i32_1 = arith.constant 0 : i32
    return %c0_i32, %c0_i32_0 : i32, i32
  }
  func.func @transform_4(%arg0: i32) -> (i32, i32) {
    %c0_i32 = arith.constant 0 : i32
    %c0_i32_0 = arith.constant 0 : i32
    return %arg0, %c0_i32 : i32, i32
  }
  func.func @transform_5(%arg0: i32) -> (i32, i32) {
    %c0_i32 = arith.constant 0 : i32
    %c0_i32_0 = arith.constant 0 : i32
    return %arg0, %c0_i32 : i32, i32
  }
  func.func @transform_6(%arg0: i32) -> (i32, i32) {
    %c0_i32 = arith.constant 0 : i32
    %c0_i32_0 = arith.constant 0 : i32
    return %arg0, %c0_i32 : i32, i32
  }
}

</mosaic_0001>

<llo_original>
// kernel: tpu_custom_call.1
$region0: #{tpu_custom_call.1}
  #allocation0 [shape = 'u32[]', space=smem, size = 0x4, offset = 0x4, fixed_abs, tag = 'smem constant byte address 0x4 - core index']
  #allocation1 [shape = 'u32[144,128]{1,0:T(1,128)}', space=vmem, size = 0x12000, scoped, tag = 'internal scratch']
  %s0 = inlined_call_operand.hbm [shape: bf16[16,256], index: 0, kind: input, shape index: {}]
  %s1 = inlined_call_operand.hbm [shape: f32[16,128], index: 1, kind: input, shape index: {}]
  %s2 = inlined_call_operand.hbm [shape: bf16[256,640], index: 2, kind: input, shape index: {}]
  %s3 = inlined_call_operand.vmem [shape: f32[1,640], index: 3, kind: input, shape index: {}]
  %s4 = inlined_call_operand.hbm [shape: bf16[16,128], index: 4, kind: output, shape index: {0}]
  %s5 = inlined_call_operand.hbm [shape: f32[16,128], index: 5, kind: output, shape index: {1}]
  %s6 = inlined_call_operand.hbm [shape: bf16[16,128], index: 6, kind: output, shape index: {2}]
  %7 = xla_tuple %s4, %s5, %s6
  %s8 = sld [smem:[#allocation0]]
  $region54: #{tpu_custom_call.1} parent=0
    _
  %s10 = ssub.s32 1, %s8
  %s11 = scalar_select 0, %s10, %s8
  $region1: #{tpu_custom_call.1} parent=0
    #allocation2 [shape = 'u8[8192]{0}', space=vmem, size = 0x2000, scoped, tag = 'input window, operand 0, single buffered']
    #allocation3 [shape = 's32[1]{0}', space=sflag, size = 0x4, scoped, tag = 'scoped memory for tpu_custom_call.1']
    #allocation4 [shape = 's32[1]{0}', space=sflag, size = 0x4, scoped, tag = 'scoped memory for tpu_custom_call.1']
    #allocation5 [shape = 'u8[8192]{0}', space=vmem, size = 0x2000, scoped, tag = 'input window, operand 1, single buffered']
    #allocation6 [shape = 's32[1]{0}', space=sflag, size = 0x4, scoped, tag = 'scoped memory for tpu_custom_call.1']
    #allocation7 [shape = 'u8[327680]{0}', space=vmem, size = 0x50000, scoped, tag = 'input window, operand 2, single buffered']
    #allocation8 [shape = 'u8[4096]{0}', space=vmem, size = 0x1000, scoped, tag = 'output window, operand 0, single buffered']
    #allocation9 [shape = 'u8[8192]{0}', space=vmem, size = 0x2000, scoped, tag = 'output window, operand 1, single buffered']
    #allocation10 [shape = 's32[1]{0}', space=sflag, size = 0x4, scoped, tag = 'scoped memory for tpu_custom_call.1']
    #allocation11 [shape = 'u8[4096]{0}', space=vmem, size = 0x1000, scoped, tag = 'output window, operand 2, single buffered']
    %12 = vsyncpa [#allocation3], 0
    %13 = vsyncpa [#allocation6], 0
    %14 = vsyncpa [#allocation4], 0
    %15 = vsyncpa [#allocation10], 0
    // Predicated region
    $region2: #{tpu_custom_call.1} parent=1 // pred_check
      _
    $region3: #{tpu_custom_call.1} parent=1 // pred_check_branch
      %17 = sbr.rel (0) target = $region5
    $region4: #{tpu_custom_call.1} parent=1 // pred_region
      %s19 = ssub.s32 256, 256
      %20 = vsyncadd [#allocation3], %s19
      %s21 = sshll.u32 [#allocation2], 4
      %s22 = int_to_ptr.vmem [resolvable:$true] %s21
      %27 = dma.hbm_to_vmem [thread:$0]  %s0, 256, %s22, [#allocation3], 128, 128, 8
    $region5: #{tpu_custom_call.1} parent=1 // pred_fallthru
      _
    // Predicated region
    $region6: #{tpu_custom_call.1} parent=1 // pred_check
      _
    $region7: #{tpu_custom_call.1} parent=1 // pred_check_branch
      %29 = sbr.rel (0) target = $region9
    $region8: #{tpu_custom_call.1} parent=1 // pred_region
      %s31 = ssub.s32 256, 256
      %32 = vsyncadd [#allocation6], %s31
      %s33 = sshll.u32 [#allocation5], 4
      %s34 = int_to_ptr.vmem [resolvable:$true] %s33
      %39 = dma.hbm_to_vmem [thread:$0]  %s1, 256, %s34, [#allocation6], 128, 128, 8
    $region9: #{tpu_custom_call.1} parent=1 // pred_fallthru
      _
    // Predicated region
    $region10: #{tpu_custom_call.1} parent=1 // pred_check
      _
    $region11: #{tpu_custom_call.1} parent=1 // pred_check_branch
      %41 = sbr.rel (0) target = $region13
    $region12: #{tpu_custom_call.1} parent=1 // pred_region
      %s43 = ssub.s32 10240, 10240
      %44 = vsyncadd [#allocation6], %s43
      %s45 = sshll.u32 [#allocation7], 4
      %s46 = int_to_ptr.vmem [resolvable:$true] %s45
      %51 = dma.hbm_to_vmem [thread:$0]  %s2, 10240, %s46, [#allocation6], 320, 320, 20
    $region13: #{tpu_custom_call.1} parent=1 // pred_fallthru
      _
    // Predicated region
    $region14: #{tpu_custom_call.1} parent=1 // pred_check
      _
    $region15: #{tpu_custom_call.1} parent=1 // pred_check_branch
      %53 = sbr.rel (0) target = $region17
    $region16: #{tpu_custom_call.1} parent=1 // pred_region
      _
    $region17: #{tpu_custom_call.1} parent=1 // pred_fallthru
      _
    // Predicated region
    $region18: #{tpu_custom_call.1} parent=1 // pred_check
      _
    $region19: #{tpu_custom_call.1} parent=1 // pred_check_branch
      %55 = sbr.rel (0) target = $region21
    $region20: #{tpu_custom_call.1} parent=1 // pred_region
      %56 = dma.done [#allocation3], 256
    $region21: #{tpu_custom_call.1} parent=1 // pred_fallthru
      _
    // Predicated region
    $region22: #{tpu_custom_call.1} parent=1 // pred_check
      _
    $region23: #{tpu_custom_call.1} parent=1 // pred_check_branch
      %58 = sbr.rel (0) target = $region25
    $region24: #{tpu_custom_call.1} parent=1 // pred_region
      %59 = dma.done [#allocation6], 256
    $region25: #{tpu_custom_call.1} parent=1 // pred_fallthru
      _
    // Predicated region
    $region26: #{tpu_custom_call.1} parent=1 // pred_check
      _
    $region27: #{tpu_custom_call.1} parent=1 // pred_check_branch
      %61 = sbr.rel (0) target = $region29
    $region28: #{tpu_custom_call.1} parent=1 // pred_region
      %62 = dma.done [#allocation6], 10240
    $region29: #{tpu_custom_call.1} parent=1 // pred_fallthru
      _
    %v65 = vld [vmem:[#allocation2] sm:$0xff]
    %v66 = vld [vmem:[#allocation2 + $0x8] sm:$0xff]
    %v67 = vld [vmem:[#allocation7] sm:$0xff]
    %v68 = vld [vmem:[#allocation7 + $0x8] sm:$0xff]
    %v69 = vld [vmem:[#allocation7 + $0x10] sm:$0xf]
    %v70 = vld [vmem:[#allocation7 + $0x14] sm:$0xff]
    %v71 = vld [vmem:[#allocation7 + $0x1c] sm:$0xff]
    %v72 = vld [vmem:[#allocation7 + $0x24] sm:$0xf]
    %v73 = vld [vmem:[#allocation7 + $0x28] sm:$0xff]
    %v74 = vld [vmem:[#allocation7 + $0x30] sm:$0xff]
    %v75 = vld [vmem:[#allocation7 + $0x38] sm:$0xf]
    %v76 = vld [vmem:[#allocation7 + $0x3c] sm:$0xff]
    %v77 = vld [vmem:[#allocation7 + $0x44] sm:$0xff]
    %v78 = vld [vmem:[#allocation7 + $0x4c] sm:$0xf]
    %v79 = vld [vmem:[#allocation7 + $0x50] sm:$0xff]
    %v80 = vld [vmem:[#allocation7 + $0x58] sm:$0xff]
    %v81 = vld [vmem:[#allocation7 + $0x60] sm:$0xf]
    %v82 = vld [vmem:[#allocation7 + $0x64] sm:$0xff]
    %v83 = vld [vmem:[#allocation7 + $0x6c] sm:$0xff]
    %v84 = vld [vmem:[#allocation7 + $0x74] sm:$0xf]
    %v85 = vld [vmem:[#allocation7 + $0x78] sm:$0xff]
    %v86 = vld [vmem:[#allocation7 + $0x80] sm:$0xff]
    %v87 = vld [vmem:[#allocation7 + $0x88] sm:$0xf]
    %v88 = vld [vmem:[#allocation7 + $0x8c] sm:$0xff]
    %v89 = vld [vmem:[#allocation7 + $0x94] sm:$0xff]
    %v90 = vld [vmem:[#allocation7 + $0x9c] sm:$0xf]
    %v91 = vld [vmem:[#allocation7 + $0xa0] sm:$0xff]
    %v92 = vld [vmem:[#allocation7 + $0xa8] sm:$0xff]
    %v93 = vld [vmem:[#allocation7 + $0xb0] sm:$0xf]
    %v94 = vld [vmem:[#allocation7 + $0xb4] sm:$0xff]
    %v95 = vld [vmem:[#allocation7 + $0xbc] sm:$0xff]
    %v96 = vld [vmem:[#allocation7 + $0xc4] sm:$0xf]
    %v97 = vld [vmem:[#allocation7 + $0xc8] sm:$0xff]
    %v98 = vld [vmem:[#allocation7 + $0xd0] sm:$0xff]
    %v99 = vld [vmem:[#allocation7 + $0xd8] sm:$0xf]
    %v100 = vld [vmem:[#allocation7 + $0xdc] sm:$0xff]
    %v101 = vld [vmem:[#allocation7 + $0xe4] sm:$0xff]
    %v102 = vld [vmem:[#allocation7 + $0xec] sm:$0xf]
    %v103 = vld [vmem:[#allocation7 + $0xf0] sm:$0xff]
    %v104 = vld [vmem:[#allocation7 + $0xf8] sm:$0xff]
    %v105 = vld [vmem:[#allocation7 + $0x100] sm:$0xf]
    %v106 = vld [vmem:[#allocation7 + $0x104] sm:$0xff]
    %v107 = vld [vmem:[#allocation7 + $0x10c] sm:$0xff]
    %v108 = vld [vmem:[#allocation7 + $0x114] sm:$0xf]
    %v109 = vld [vmem:[#allocation7 + $0x118] sm:$0xff]
    %v110 = vld [vmem:[#allocation7 + $0x120] sm:$0xff]
    %v111 = vld [vmem:[#allocation7 + $0x128] sm:$0xf]
    %v112 = vld [vmem:[#allocation7 + $0x12c] sm:$0xff]
    %v113 = vld [vmem:[#allocation7 + $0x134] sm:$0xff]
    %v114 = vld [vmem:[#allocation7 + $0x13c] sm:$0xf]
    %v115 = vld [vmem:[#allocation7 + $0x140] sm:$0xff]
    %v116 = vld [vmem:[#allocation7 + $0x148] sm:$0xff]
    %v117 = vld [vmem:[#allocation7 + $0x150] sm:$0xf]
    %v118 = vld [vmem:[#allocation7 + $0x154] sm:$0xff]
    %v119 = vld [vmem:[#allocation7 + $0x15c] sm:$0xff]
    %v120 = vld [vmem:[#allocation7 + $0x164] sm:$0xf]
    %v121 = vld [vmem:[#allocation7 + $0x168] sm:$0xff]
    %v122 = vld [vmem:[#allocation7 + $0x170] sm:$0xff]
    %v123 = vld [vmem:[#allocation7 + $0x178] sm:$0xf]
    %v124 = vld [vmem:[#allocation7 + $0x17c] sm:$0xff]
    %v125 = vld [vmem:[#allocation7 + $0x184] sm:$0xff]
    %v126 = vld [vmem:[#allocation7 + $0x18c] sm:$0xf]
    %v127 = vld [vmem:[#allocation7 + $0x190] sm:$0xff]
    %v128 = vld [vmem:[#allocation7 + $0x198] sm:$0xff]
    %v129 = vld [vmem:[#allocation7 + $0x1a0] sm:$0xf]
    %v130 = vld [vmem:[#allocation7 + $0x1a4] sm:$0xff]
    %v131 = vld [vmem:[#allocation7 + $0x1ac] sm:$0xff]
    %v132 = vld [vmem:[#allocation7 + $0x1b4] sm:$0xf]
    %v133 = vld [vmem:[#allocation7 + $0x1b8] sm:$0xff]
    %v134 = vld [vmem:[#allocation7 + $0x1c0] sm:$0xff]
    %v135 = vld [vmem:[#allocation7 + $0x1c8] sm:$0xf]
    %v136 = vld [vmem:[#allocation7 + $0x1cc] sm:$0xff]
    %v137 = vld [vmem:[#allocation7 + $0x1d4] sm:$0xff]
    %v138 = vld [vmem:[#allocation7 + $0x1dc] sm:$0xf]
    %v139 = vld [vmem:[#allocation7 + $0x1e0] sm:$0xff]
    %v140 = vld [vmem:[#allocation7 + $0x1e8] sm:$0xff]
    %v141 = vld [vmem:[#allocation7 + $0x1f0] sm:$0xf]
    %v142 = vld [vmem:[#allocation7 + $0x1f4] sm:$0xff]
    %v143 = vld [vmem:[#allocation7 + $0x1fc] sm:$0xff]
    %v144 = vld [vmem:[#allocation7 + $0x204] sm:$0xf]
    %v145 = vld [vmem:[#allocation7 + $0x208] sm:$0xff]
    %v146 = vld [vmem:[#allocation7 + $0x210] sm:$0xff]
    %v147 = vld [vmem:[#allocation7 + $0x218] sm:$0xf]
    %v148 = vld [vmem:[#allocation7 + $0x21c] sm:$0xff]
    %v149 = vld [vmem:[#allocation7 + $0x224] sm:$0xff]
    %v150 = vld [vmem:[#allocation7 + $0x22c] sm:$0xf]
    %v151 = vld [vmem:[#allocation7 + $0x230] sm:$0xff]
    %v152 = vld [vmem:[#allocation7 + $0x238] sm:$0xff]
    %v153 = vld [vmem:[#allocation7 + $0x240] sm:$0xf]
    %v154 = vld [vmem:[#allocation7 + $0x244] sm:$0xff]
    %v155 = vld [vmem:[#allocation7 + $0x24c] sm:$0xff]
    %v156 = vld [vmem:[#allocation7 + $0x254] sm:$0xf]
    %v157 = vld [vmem:[#allocation7 + $0x258] sm:$0xff]
    %v158 = vld [vmem:[#allocation7 + $0x260] sm:$0xff]
    %v159 = vld [vmem:[#allocation7 + $0x268] sm:$0xf]
    %v160 = vld [vmem:[#allocation7 + $0x26c] sm:$0xff]
    %v161 = vld [vmem:[#allocation7 + $0x274] sm:$0xff]
    %v162 = vld [vmem:[#allocation7 + $0x27c] sm:$0xf]
    %v163 = vld [vmem:[%s3] sm:$0x1f]
    %v165 = vlaneseq
    %v166 = vshrl.u32 %v165, 7
    %v167 = vsub.s32 0, %v166
    %v168 = vrot.slane %v163, %v167
    %v169 = vlaneseq
    %v170 = vshrl.u32 %v169, 7
    %v171 = vsub.s32 1, %v170
    %v172 = vrot.slane %v163, %v171
    %v173 = vlaneseq
    %v174 = vshrl.u32 %v173, 7
    %v175 = vsub.s32 2, %v174
    %v176 = vrot.slane %v163, %v175
    %v177 = vlaneseq
    %v178 = vshrl.u32 %v177, 7
    %v179 = vsub.s32 3, %v178
    %v180 = vrot.slane %v163, %v179
    %v181 = vlaneseq
    %v182 = vshrl.u32 %v181, 7
    %v183 = vsub.s32 4, %v182
    %v184 = vrot.slane %v163, %v183
    %v192 = vunpack.c.l.b16 %v65
    %v193 = vunpack.c.h.b16 %v65
    %v194 = vunpack.c.l.b16 %v66
    %v195 = vunpack.c.h.b16 %v66
    %v196 = vpack.c.b16 %v194, %v192
    %v197 = vpack.c.b16 %v195, %v193
    %v296 = vunpack.c.l.b16 %v67
    %v297 = vunpack.c.h.b16 %v67
    %v298 = vunpack.c.l.b16 %v68
    %v299 = vunpack.c.h.b16 %v68
    %v300 = vunpack.c.l.b16 %v69
    %v301 = vunpack.c.l.b16 %v70
    %v302 = vunpack.c.h.b16 %v70
    %v303 = vunpack.c.l.b16 %v71
    %v304 = vunpack.c.h.b16 %v71
    %v305 = vunpack.c.l.b16 %v72
    %v306 = vunpack.c.l.b16 %v73
    %v307 = vunpack.c.h.b16 %v73
    %v308 = vunpack.c.l.b16 %v74
    %v309 = vunpack.c.h.b16 %v74
    %v310 = vunpack.c.l.b16 %v75
    %v311 = vunpack.c.l.b16 %v76
    %v312 = vunpack.c.h.b16 %v76
    %v313 = vunpack.c.l.b16 %v77
    %v314 = vunpack.c.h.b16 %v77
    %v315 = vunpack.c.l.b16 %v78
    %v316 = vunpack.c.l.b16 %v79
    %v317 = vunpack.c.h.b16 %v79
    %v318 = vunpack.c.l.b16 %v80
    %v319 = vunpack.c.h.b16 %v80
    %v320 = vunpack.c.l.b16 %v81
    %v321 = vunpack.c.l.b16 %v82
    %v322 = vunpack.c.h.b16 %v82
    %v323 = vunpack.c.l.b16 %v83
    %v324 = vunpack.c.h.b16 %v83
    %v325 = vunpack.c.l.b16 %v84
    %v326 = vunpack.c.l.b16 %v85
    %v327 = vunpack.c.h.b16 %v85
    %v328 = vunpack.c.l.b16 %v86
    %v329 = vunpack.c.h.b16 %v86
    %v330 = vunpack.c.l.b16 %v87
    %v331 = vunpack.c.l.b16 %v88
    %v332 = vunpack.c.h.b16 %v88
    %v333 = vunpack.c.l.b16 %v89
    %v334 = vunpack.c.h.b16 %v89
    %v335 = vunpack.c.l.b16 %v90
    %v336 = vunpack.c.l.b16 %v91
    %v337 = vunpack.c.h.b16 %v91
    %v338 = vunpack.c.l.b16 %v92
    %v339 = vunpack.c.h.b16 %v92
    %v340 = vunpack.c.l.b16 %v93
    %v341 = vunpack.c.l.b16 %v94
    %v342 = vunpack.c.h.b16 %v94
    %v343 = vunpack.c.l.b16 %v95
    %v344 = vunpack.c.h.b16 %v95
    %v345 = vunpack.c.l.b16 %v96
    %v346 = vunpack.c.l.b16 %v97
    %v347 = vunpack.c.h.b16 %v97
    %v348 = vunpack.c.l.b16 %v98
    %v349 = vunpack.c.h.b16 %v98
    %v350 = vunpack.c.l.b16 %v99
    %v351 = vunpack.c.l.b16 %v100
    %v352 = vunpack.c.h.b16 %v100
    %v353 = vunpack.c.l.b16 %v101
    %v354 = vunpack.c.h.b16 %v101
    %v355 = vunpack.c.l.b16 %v102
    %v356 = vunpack.c.l.b16 %v103
    %v357 = vunpack.c.h.b16 %v103
    %v358 = vunpack.c.l.b16 %v104
    %v359 = vunpack.c.h.b16 %v104
    %v360 = vunpack.c.l.b16 %v105
    %v361 = vunpack.c.l.b16 %v106
    %v362 = vunpack.c.h.b16 %v106
    %v363 = vunpack.c.l.b16 %v107
    %v364 = vunpack.c.h.b16 %v107
    %v365 = vunpack.c.l.b16 %v108
    %v366 = vunpack.c.l.b16 %v109
    %v367 = vunpack.c.h.b16 %v109
    %v368 = vunpack.c.l.b16 %v110
    %v369 = vunpack.c.h.b16 %v110
    %v370 = vunpack.c.l.b16 %v111
    %v371 = vunpack.c.l.b16 %v112
    %v372 = vunpack.c.h.b16 %v112
    %v373 = vunpack.c.l.b16 %v113
    %v374 = vunpack.c.h.b16 %v113
    %v375 = vunpack.c.l.b16 %v114
    %v376 = vunpack.c.l.b16 %v115
    %v377 = vunpack.c.h.b16 %v115
    %v378 = vunpack.c.l.b16 %v116
    %v379 = vunpack.c.h.b16 %v116
    %v380 = vunpack.c.l.b16 %v117
    %v381 = vunpack.c.l.b16 %v118
    %v382 = vunpack.c.h.b16 %v118
    %v383 = vunpack.c.l.b16 %v119
    %v384 = vunpack.c.h.b16 %v119
    %v385 = vunpack.c.l.b16 %v120
    %v386 = vunpack.c.l.b16 %v121
    %v387 = vunpack.c.h.b16 %v121
    %v388 = vunpack.c.l.b16 %v122
    %v389 = vunpack.c.h.b16 %v122
    %v390 = vunpack.c.l.b16 %v123
    %v391 = vunpack.c.l.b16 %v124
    %v392 = vunpack.c.h.b16 %v124
    %v393 = vunpack.c.l.b16 %v125
    %v394 = vunpack.c.h.b16 %v125
    %v395 = vunpack.c.l.b16 %v126
    %v396 = vunpack.c.l.b16 %v127
    %v397 = vunpack.c.h.b16 %v127
    %v398 = vunpack.c.l.b16 %v128
    %v399 = vunpack.c.h.b16 %v128
    %v400 = vunpack.c.l.b16 %v129
    %v401 = vunpack.c.l.b16 %v130
    %v402 = vunpack.c.h.b16 %v130
    %v403 = vunpack.c.l.b16 %v131
    %v404 = vunpack.c.h.b16 %v131
    %v405 = vunpack.c.l.b16 %v132
    %v406 = vunpack.c.l.b16 %v133
    %v407 = vunpack.c.h.b16 %v133
    %v408 = vunpack.c.l.b16 %v134
    %v409 = vunpack.c.h.b16 %v134
    %v410 = vunpack.c.l.b16 %v135
    %v411 = vunpack.c.l.b16 %v136
    %v412 = vunpack.c.h.b16 %v136
    %v413 = vunpack.c.l.b16 %v137
    %v414 = vunpack.c.h.b16 %v137
    %v415 = vunpack.c.l.b16 %v138
    %v416 = vunpack.c.l.b16 %v139
    %v417 = vunpack.c.h.b16 %v139
    %v418 = vunpack.c.l.b16 %v140
    %v419 = vunpack.c.h.b16 %v140
    %v420 = vunpack.c.l.b16 %v141
    %v421 = vunpack.c.l.b16 %v142
    %v422 = vunpack.c.h.b16 %v142
    %v423 = vunpack.c.l.b16 %v143
    %v424 = vunpack.c.h.b16 %v143
    %v425 = vunpack.c.l.b16 %v144
    %v426 = vunpack.c.l.b16 %v145
    %v427 = vunpack.c.h.b16 %v145
    %v428 = vunpack.c.l.b16 %v146
    %v429 = vunpack.c.h.b16 %v146
    %v430 = vunpack.c.l.b16 %v147
    %v431 = vunpack.c.l.b16 %v148
    %v432 = vunpack.c.h.b16 %v148
    %v433 = vunpack.c.l.b16 %v149
    %v434 = vunpack.c.h.b16 %v149
    %v435 = vunpack.c.l.b16 %v150
    %v436 = vunpack.c.l.b16 %v151
    %v437 = vunpack.c.h.b16 %v151
    %v438 = vunpack.c.l.b16 %v152
    %v439 = vunpack.c.h.b16 %v152
    %v440 = vunpack.c.l.b16 %v153
    %v441 = vunpack.c.l.b16 %v154
    %v442 = vunpack.c.h.b16 %v154
    %v443 = vunpack.c.l.b16 %v155
    %v444 = vunpack.c.h.b16 %v155
    %v445 = vunpack.c.l.b16 %v156
    %v446 = vunpack.c.l.b16 %v157
    %v447 = vunpack.c.h.b16 %v157
    %v448 = vunpack.c.l.b16 %v158
    %v449 = vunpack.c.h.b16 %v158
    %v450 = vunpack.c.l.b16 %v159
    %v451 = vunpack.c.l.b16 %v160
    %v452 = vunpack.c.h.b16 %v160
    %v453 = vunpack.c.l.b16 %v161
    %v454 = vunpack.c.h.b16 %v161
    %v455 = vunpack.c.l.b16 %v162
    %v456 = vpack.c.b16 %v301, %v296
    %v457 = vpack.c.b16 %v302, %v297
    %v458 = vpack.c.b16 %v303, %v298
    %v459 = vpack.c.b16 %v304, %v299
    %v460 = vpack.c.b16 %v305, %v300
    %v461 = vpack.c.b16 %v311, %v306
    %v462 = vpack.c.b16 %v312, %v307
    %v463 = vpack.c.b16 %v313, %v308
    %v464 = vpack.c.b16 %v314, %v309
    %v465 = vpack.c.b16 %v315, %v310
    %v466 = vpack.c.b16 %v321, %v316
    %v467 = vpack.c.b16 %v322, %v317
    %v468 = vpack.c.b16 %v323, %v318
    %v469 = vpack.c.b16 %v324, %v319
    %v470 = vpack.c.b16 %v325, %v320
    %v471 = vpack.c.b16 %v331, %v326
    %v472 = vpack.c.b16 %v332, %v327
    %v473 = vpack.c.b16 %v333, %v328
    %v474 = vpack.c.b16 %v334, %v329
    %v475 = vpack.c.b16 %v335, %v330
    %v476 = vpack.c.b16 %v341, %v336
    %v477 = vpack.c.b16 %v342, %v337
    %v478 = vpack.c.b16 %v343, %v338
    %v479 = vpack.c.b16 %v344, %v339
    %v480 = vpack.c.b16 %v345, %v340
    %v481 = vpack.c.b16 %v351, %v346
    %v482 = vpack.c.b16 %v352, %v347
    %v483 = vpack.c.b16 %v353, %v348
    %v484 = vpack.c.b16 %v354, %v349
    %v485 = vpack.c.b16 %v355, %v350
    %v486 = vpack.c.b16 %v361, %v356
    %v487 = vpack.c.b16 %v362, %v357
    %v488 = vpack.c.b16 %v363, %v358
    %v489 = vpack.c.b16 %v364, %v359
    %v490 = vpack.c.b16 %v365, %v360
    %v491 = vpack.c.b16 %v371, %v366
    %v492 = vpack.c.b16 %v372, %v367
    %v493 = vpack.c.b16 %v373, %v368
    %v494 = vpack.c.b16 %v374, %v369
    %v495 = vpack.c.b16 %v375, %v370
    %v496 = vpack.c.b16 %v381, %v376
    %v497 = vpack.c.b16 %v382, %v377
    %v498 = vpack.c.b16 %v383, %v378
    %v499 = vpack.c.b16 %v384, %v379
    %v500 = vpack.c.b16 %v385, %v380
    %v501 = vpack.c.b16 %v391, %v386
    %v502 = vpack.c.b16 %v392, %v387
    %v503 = vpack.c.b16 %v393, %v388
    %v504 = vpack.c.b16 %v394, %v389
    %v505 = vpack.c.b16 %v395, %v390
    %v506 = vpack.c.b16 %v401, %v396
    %v507 = vpack.c.b16 %v402, %v397
    %v508 = vpack.c.b16 %v403, %v398
    %v509 = vpack.c.b16 %v404, %v399
    %v510 = vpack.c.b16 %v405, %v400
    %v511 = vpack.c.b16 %v411, %v406
    %v512 = vpack.c.b16 %v412, %v407
    %v513 = vpack.c.b16 %v413, %v408
    %v514 = vpack.c.b16 %v414, %v409
    %v515 = vpack.c.b16 %v415, %v410
    %v516 = vpack.c.b16 %v421, %v416
    %v517 = vpack.c.b16 %v422, %v417
    %v518 = vpack.c.b16 %v423, %v418
    %v519 = vpack.c.b16 %v424, %v419
    %v520 = vpack.c.b16 %v425, %v420
    %v521 = vpack.c.b16 %v431, %v426
    %v522 = vpack.c.b16 %v432, %v427
    %v523 = vpack.c.b16 %v433, %v428
    %v524 = vpack.c.b16 %v434, %v429
    %v525 = vpack.c.b16 %v435, %v430
    %v526 = vpack.c.b16 %v441, %v436
    %v527 = vpack.c.b16 %v442, %v437
    %v528 = vpack.c.b16 %v443, %v438
    %v529 = vpack.c.b16 %v444, %v439
    %v530 = vpack.c.b16 %v445, %v440
    %v531 = vpack.c.b16 %v451, %v446
    %v532 = vpack.c.b16 %v452, %v447
    %v533 = vpack.c.b16 %v453, %v448
    %v534 = vpack.c.b16 %v454, %v449
    %v535 = vpack.c.b16 %v455, %v450
    %616 = vmatprep.subr.bf16.mxu0 %v492
    %617 = vmatpush1.bf16.msra.mxu0 %v491
    %618 = vmatprep.subr.bf16.mxu0 %v487
    %619 = vmatpush1.bf16.msra.mxu0 %v486
    %620 = vmatprep.subr.bf16.mxu0 %v482
    %621 = vmatpush1.bf16.msra.mxu0 %v481
    %622 = vmatprep.subr.bf16.mxu0 %v477
    %623 = vmatpush1.bf16.msra.mxu0 %v476
    %624 = vmatprep.subr.bf16.mxu0 %v472
    %625 = vmatpush1.bf16.msra.mxu0 %v471
    %626 = vmatprep.subr.bf16.mxu0 %v467
    %627 = vmatpush1.bf16.msra.mxu0 %v466
    %628 = vmatprep.subr.bf16.mxu0 %v462
    %629 = vmatpush1.bf16.msra.mxu0 %v461
    %630 = vmatprep.subr.bf16.mxu0 %v457
    %631 = vmatpush1.bf16.msra.mxu0 %v456
    %632 = vmatprep.subr.bf16.mxu0 %v532
    %633 = vmatpush2.bf16.msra.mxu0 %v531
    %634 = vmatprep.subr.bf16.mxu0 %v527
    %635 = vmatpush2.bf16.msra.mxu0 %v526
    %636 = vmatprep.subr.bf16.mxu0 %v522
    %637 = vmatpush2.bf16.msra.mxu0 %v521
    %638 = vmatprep.subr.bf16.mxu0 %v517
    %639 = vmatpush2.bf16.msra.mxu0 %v516
    %640 = vmatprep.subr.bf16.mxu0 %v512
    %641 = vmatpush2.bf16.msra.mxu0 %v511
    %642 = vmatprep.subr.bf16.mxu0 %v507
    %643 = vmatpush2.bf16.msra.mxu0 %v506
    %644 = vmatprep.subr.bf16.mxu0 %v502
    %645 = vmatpush2.bf16.msra.mxu0 %v501
    %646 = vmatprep.subr.bf16.mxu0 %v497
    %647 = vmatpush2.bf16.msra.mxu0 %v496
    %648 = vmatprep.mubr.bf16.mxu0 %v197
    %649 = vmatmul.mubr.bf16.gmra.mxu0 %v196
    %v650 = vpop.f32.mrf.mxu0
    %v651 = vadd.f32 %v168, %v650
    %v652 = vpop.f32.mrf.mxu0
    %v653 = vadd.f32 %v172, %v652
    %v654 = vpop.f32.mrf.mxu0
    %v655 = vadd.f32 %v168, %v654
    %v656 = vpop.f32.mrf.mxu0
    %v657 = vadd.f32 %v172, %v656
    %658 = vdwg.mxu0
    %659 = vmatprep.subr.bf16.mxu0 %v494
    %660 = vmatpush1.bf16.msra.mxu0 %v493
    %661 = vmatprep.subr.bf16.mxu0 %v489
    %662 = vmatpush1.bf16.msra.mxu0 %v488
    %663 = vmatprep.subr.bf16.mxu0 %v484
    %664 = vmatpush1.bf16.msra.mxu0 %v483
    %665 = vmatprep.subr.bf16.mxu0 %v479
    %666 = vmatpush1.bf16.msra.mxu0 %v478
    %667 = vmatprep.subr.bf16.mxu0 %v474
    %668 = vmatpush1.bf16.msra.mxu0 %v473
    %669 = vmatprep.subr.bf16.mxu0 %v469
    %670 = vmatpush1.bf16.msra.mxu0 %v468
    %671 = vmatprep.subr.bf16.mxu0 %v464
    %672 = vmatpush1.bf16.msra.mxu0 %v463
    %673 = vmatprep.subr.bf16.mxu0 %v459
    %674 = vmatpush1.bf16.msra.mxu0 %v458
    %675 = vmatprep.subr.bf16.mxu0 %v534
    %676 = vmatpush2.bf16.msra.mxu0 %v533
    %677 = vmatprep.subr.bf16.mxu0 %v529
    %678 = vmatpush2.bf16.msra.mxu0 %v528
    %679 = vmatprep.subr.bf16.mxu0 %v524
    %680 = vmatpush2.bf16.msra.mxu0 %v523
    %681 = vmatprep.subr.bf16.mxu0 %v519
    %682 = vmatpush2.bf16.msra.mxu0 %v518
    %683 = vmatprep.subr.bf16.mxu0 %v514
    %684 = vmatpush2.bf16.msra.mxu0 %v513
    %685 = vmatprep.subr.bf16.mxu0 %v509
    %686 = vmatpush2.bf16.msra.mxu0 %v508
    %687 = vmatprep.subr.bf16.mxu0 %v504
    %688 = vmatpush2.bf16.msra.mxu0 %v503
    %689 = vmatprep.subr.bf16.mxu0 %v499
    %690 = vmatpush2.bf16.msra.mxu0 %v498
    %691 = vmatprep.mubr.bf16.mxu0 %v197
    %692 = vmatmul.mubr.bf16.gmra.mxu0 %v196
    %v693 = vpop.f32.mrf.mxu0
    %v694 = vadd.f32 %v176, %v693
    %v695 = vpop.f32.mrf.mxu0
    %v696 = vadd.f32 %v180, %v695
    %v697 = vpop.f32.mrf.mxu0
    %v698 = vadd.f32 %v176, %v697
    %v699 = vpop.f32.mrf.mxu0
    %v700 = vadd.f32 %v180, %v699
    %701 = vdwg.mxu0
    %702 = vmatprep.subr.bf16.mxu0 0
    %703 = vmatpush1.bf16.msra.mxu0 %v495
    %704 = vmatprep.subr.bf16.mxu0 0
    %705 = vmatpush1.bf16.msra.mxu0 %v490
    %706 = vmatprep.subr.bf16.mxu0 0
    %707 = vmatpush1.bf16.msra.mxu0 %v485
    %708 = vmatprep.subr.bf16.mxu0 0
    %709 = vmatpush1.bf16.msra.mxu0 %v480
    %710 = vmatprep.subr.bf16.mxu0 0
    %711 = vmatpush1.bf16.msra.mxu0 %v475
    %712 = vmatprep.subr.bf16.mxu0 0
    %713 = vmatpush1.bf16.msra.mxu0 %v470
    %714 = vmatprep.subr.bf16.mxu0 0
    %715 = vmatpush1.bf16.msra.mxu0 %v465
    %716 = vmatprep.subr.bf16.mxu0 0
    %717 = vmatpush1.bf16.msra.mxu0 %v460
    %718 = vmatprep.subr.bf16.mxu0 0
    %719 = vmatpush2.bf16.msra.mxu0 %v535
    %720 = vmatprep.subr.bf16.mxu0 0
    %721 = vmatpush2.bf16.msra.mxu0 %v530
    %722 = vmatprep.subr.bf16.mxu0 0
    %723 = vmatpush2.bf16.msra.mxu0 %v525
    %724 = vmatprep.subr.bf16.mxu0 0
    %725 = vmatpush2.bf16.msra.mxu0 %v520
    %726 = vmatprep.subr.bf16.mxu0 0
    %727 = vmatpush2.bf16.msra.mxu0 %v515
    %728 = vmatprep.subr.bf16.mxu0 0
    %729 = vmatpush2.bf16.msra.mxu0 %v510
    %730 = vmatprep.subr.bf16.mxu0 0
    %731 = vmatpush2.bf16.msra.mxu0 %v505
    %732 = vmatprep.subr.bf16.mxu0 0
    %733 = vmatpush2.bf16.msra.mxu0 %v500
    %734 = vmatprep.mubr.bf16.mxu0 %v197
    %735 = vmatmul.mubr.bf16.gmra.mxu0 %v196
    %v736 = vpop.f32.mrf.mxu0
    %v737 = vadd.f32 %v184, %v736
    %v738 = vpop.f32.mrf.mxu0
    %v739 = vpop.f32.mrf.mxu0
    %v740 = vadd.f32 %v184, %v739
    %v741 = vpop.f32.mrf.mxu0
    %742 = vdwg.mxu0
    %v743 = vpack.c.bf16 %v655, %v651
    %v744 = vpack.c.bf16 %v657, %v653
    %v745 = vpack.c.bf16 %v698, %v694
    %v746 = vpack.c.bf16 %v700, %v696
    %v747 = vpack.c.bf16 %v740, %v737
    %v748 = vmul.bf16 %v743, 1056980736
    %v749 = vtanh.bf16.pop %v748
    %v750 = vmul.bf16 %v749, 1056980736
    %v751 = vadd.bf16 %v750, 1056980736
    %v752 = vunpack.c.l.bf16 %v751
    %v753 = vunpack.c.h.bf16 %v751
    %v754 = vmul.bf16 %v744, 1056980736
    %v755 = vtanh.bf16.pop %v754
    %v756 = vmul.bf16 %v755, 1056980736
    %v757 = vadd.bf16 %v756, 1056980736
    %v758 = vunpack.c.l.bf16 %v757
    %v759 = vunpack.c.h.bf16 %v757
    %v760 = vtanh.bf16.pop %v745
    %v761 = vunpack.c.l.bf16 %v760
    %v762 = vunpack.c.h.bf16 %v760
    %v763 = vmul.bf16 %v746, 1056980736
    %v764 = vtanh.bf16.pop %v763
    %v765 = vmul.bf16 %v764, 1056980736
    %v766 = vadd.bf16 %v765, 1056980736
    %v767 = vmul.bf16 %v747, 1056980736
    %v768 = vtanh.bf16.pop %v767
    %v769 = vmul.bf16 %v768, 1056980736
    %v770 = vadd.bf16 %v769, 1056980736
    %v771 = vld [vmem:[#allocation5] sm:$0xff]
    %v772 = vld [vmem:[#allocation5 + $0x8] sm:$0xff]
    %v773 = vmul.f32 %v758, %v771
    %v774 = vmul.f32 %v759, %v772
    %v775 = vmul.f32 %v752, %v761
    %v776 = vmul.f32 %v753, %v762
    %v777 = vadd.f32 %v773, %v775
    %v778 = vadd.f32 %v774, %v776
    %v779 = vpack.c.bf16 %v778, %v777
    %v780 = vtanh.bf16.pop %v779
    %v781 = vmul.bf16 %v766, %v780
    %v783 = vunpack.c.l.b16 %v781
    %v784 = vunpack.c.h.b16 %v781
    %v785 = vpack.c.b16 %v783, %v783
    %v786 = vpack.c.b16 %v784, %v784
    %789 = vst [vmem:[#allocation8] sm:$0xf] %v785
    %790 = vst [vmem:[#allocation8 + $0x4] sm:$0xf] %v786
    %791 = vst [vmem:[#allocation9] sm:$0xff] %v777
    %792 = vst [vmem:[#allocation9 + $0x8] sm:$0xff] %v778
    %v793 = vmul.bf16 %v770, %v780
    %v795 = vunpack.c.l.b16 %v793
    %v796 = vunpack.c.h.b16 %v793
    %v797 = vpack.c.b16 %v795, %v795
    %v798 = vpack.c.b16 %v796, %v796
    %801 = vst [vmem:[#allocation11] sm:$0xf] %v797
    %802 = vst [vmem:[#allocation11 + $0x4] sm:$0xf] %v798
    // Predicated region
    $region30: #{tpu_custom_call.1} parent=1 // pred_check
      _
    $region31: #{tpu_custom_call.1} parent=1 // pred_check_branch
      %804 = sbr.rel (0) target = $region33
    $region32: #{tpu_custom_call.1} parent=1 // pred_region
      %s806 = ssub.s32 128, 128
      %807 = vsyncadd [#allocation4], %s806
      %s808 = sshll.u32 [#allocation8], 4
      %s809 = int_to_ptr.vmem [resolvable:$true] %s808
      %814 = dma.vmem_to_hbm [thread:$0]  %s809, 128, %s4, [#allocation4], 64, 64, 4
    $region33: #{tpu_custom_call.1} parent=1 // pred_fallthru
      _
    // Predicated region
    $region34: #{tpu_custom_call.1} parent=1 // pred_check
      _
    $region35: #{tpu_custom_call.1} parent=1 // pred_check_branch
      %816 = sbr.rel (0) target = $region37
    $region36: #{tpu_custom_call.1} parent=1 // pred_region
      %s818 = ssub.s32 256, 256
      %819 = vsyncadd [#allocation10], %s818
      %s820 = sshll.u32 [#allocation9], 4
      %s821 = int_to_ptr.vmem [resolvable:$true] %s820
      %826 = dma.vmem_to_hbm [thread:$0]  %s821, 256, %s5, [#allocation10], 128, 128, 8
    $region37: #{tpu_custom_call.1} parent=1 // pred_fallthru
      _
    // Predicated region
    $region38: #{tpu_custom_call.1} parent=1 // pred_check
      _
    $region39: #{tpu_custom_call.1} parent=1 // pred_check_branch
      %828 = sbr.rel (0) target = $region41
    $region40: #{tpu_custom_call.1} parent=1 // pred_region
      %s830 = ssub.s32 128, 128
      %831 = vsyncadd [#allocation10], %s830
      %s832 = sshll.u32 [#allocation11], 4
      %s833 = int_to_ptr.vmem [resolvable:$true] %s832
      %838 = dma.vmem_to_hbm [thread:$0]  %s833, 128, %s6, [#allocation10], 64, 64, 4
    $region41: #{tpu_custom_call.1} parent=1 // pred_fallthru
      _
    // Predicated region
    $region42: #{tpu_custom_call.1} parent=1 // pred_check
      _
    $region43: #{tpu_custom_call.1} parent=1 // pred_check_branch
      %840 = sbr.rel (0) target = $region45
    $region44: #{tpu_custom_call.1} parent=1 // pred_region
      %841 = dma.done [#allocation4], 128
    $region45: #{tpu_custom_call.1} parent=1 // pred_fallthru
      _
    // Predicated region
    $region46: #{tpu_custom_call.1} parent=1 // pred_check
      _
    $region47: #{tpu_custom_call.1} parent=1 // pred_check_branch
      %843 = sbr.rel (0) target = $region49
    $region48: #{tpu_custom_call.1} parent=1 // pred_region
      %844 = dma.done [#allocation10], 256
    $region49: #{tpu_custom_call.1} parent=1 // pred_fallthru
      _
    // Predicated region
    $region50: #{tpu_custom_call.1} parent=1 // pred_check
      _
    $region51: #{tpu_custom_call.1} parent=1 // pred_check_branch
      %846 = sbr.rel (0) target = $region53
    $region52: #{tpu_custom_call.1} parent=1 // pred_region
      %847 = dma.done [#allocation10], 128
    $region53: #{tpu_custom_call.1} parent=1 // pred_fallthru
      _
    %848 = vsyncpa [#allocation3], 1
    %849 = vsyncpa [#allocation6], 1
    %850 = vsyncpa [#allocation4], 1
    %851 = vsyncpa [#allocation10], 1

// kernel: tpu_custom_call.1
$region0: #{tpu_custom_call.1}
  #allocation0 [shape = 'u32[]', space=smem, size = 0x4, offset = 0x4, fixed_abs, tag = 'smem constant byte address 0x4 - core index']
  #allocation1 [shape = 'u32[144,128]{1,0:T(1,128)}', space=vmem, size = 0x12000, scoped, tag = 'internal scratch']
  %s0 = inlined_call_operand.hbm [shape: bf16[16,256], index: 0, kind: input, shape index: {}]
  %s1 = inlined_call_operand.hbm [shape: f32[16,128], index: 1, kind: input, shape index: {}]
  %s2 = inlined_call_operand.hbm [shape: bf16[256,640], index: 2, kind: input, shape index: {}]
  %s3 = inlined_call_operand.vmem [shape: f32[1,640], index: 3, kind: input, shape index: {}]
  %s4 = inlined_call_operand.hbm [shape: bf16[16,128], index: 4, kind: output, shape index: {0}]
  %s5 = inlined_call_operand.hbm [shape: f32[16,128], index: 5, kind: output, shape index: {1}]
  %s6 = inlined_call_operand.hbm [shape: bf16[16,128], index: 6, kind: output, shape index: {2}]
  %7 = xla_tuple %s4, %s5, %s6
  %s8 = sld [smem:[#allocation0]]
  $region54: #{tpu_custom_call.1} parent=0
    _
  %s10 = ssub.s32 1, %s8
  %s11 = scalar_select 0, %s10, %s8
  $region1: #{tpu_custom_call.1} parent=0
    #allocation2 [shape = 'u8[8192]{0}', space=vmem, size = 0x2000, scoped, tag = 'input window, operand 0, single buffered']
    #allocation3 [shape = 's32[1]{0}', space=sflag, size = 0x4, scoped, tag = 'scoped memory for tpu_custom_call.1']
    #allocation4 [shape = 's32[1]{0}', space=sflag, size = 0x4, scoped, tag = 'scoped memory for tpu_custom_call.1']
    #allocation5 [shape = 'u8[8192]{0}', space=vmem, size = 0x2000, scoped, tag = 'input window, operand 1, single buffered']
    #allocation6 [shape = 's32[1]{0}', space=sflag, size = 0x4, scoped, tag = 'scoped memory for tpu_custom_call.1']
    #allocation7 [shape = 'u8[327680]{0}', space=vmem, size = 0x50000, scoped, tag = 'input window, operand 2, single buffered']
    #allocation8 [shape = 'u8[4096]{0}', space=vmem, size = 0x1000, scoped, tag = 'output window, operand 0, single buffered']
    #allocation9 [shape = 'u8[8192]{0}', space=vmem, size = 0x2000, scoped, tag = 'output window, operand 1, single buffered']
    #allocation10 [shape = 's32[1]{0}', space=sflag, size = 0x4, scoped, tag = 'scoped memory for tpu_custom_call.1']
    #allocation11 [shape = 'u8[4096]{0}', space=vmem, size = 0x1000, scoped, tag = 'output window, operand 2, single buffered']
    %12 = vsyncpa [#allocation3], 0
    %13 = vsyncpa [#allocation6], 0
    %14 = vsyncpa [#allocation4], 0
    %15 = vsyncpa [#allocation10], 0
    // Predicated region
    $region2: #{tpu_custom_call.1} parent=1 // pred_check
      _
    $region3: #{tpu_custom_call.1} parent=1 // pred_check_branch
      %17 = sbr.rel (0) target = $region5
    $region4: #{tpu_custom_call.1} parent=1 // pred_region
      %s19 = ssub.s32 256, 256
      %20 = vsyncadd [#allocation3], %s19
      %s21 = sshll.u32 [#allocation2], 4
      %s22 = int_to_ptr.vmem [resolvable:$true] %s21
      %27 = dma.hbm_to_vmem [thread:$0]  %s0, 256, %s22, [#allocation3], 128, 128, 8
    $region5: #{tpu_custom_call.1} parent=1 // pred_fallthru
      _
    // Predicated region
    $region6: #{tpu_custom_call.1} parent=1 // pred_check
      _
    $region7: #{tpu_custom_call.1} parent=1 // pred_check_branch
      %29 = sbr.rel (0) target = $region9
    $region8: #{tpu_custom_call.1} parent=1 // pred_region
      %s31 = ssub.s32 256, 256
      %32 = vsyncadd [#allocation6], %s31
      %s33 = sshll.u32 [#allocation5], 4
      %s34 = int_to_ptr.vmem [resolvable:$true] %s33
      %39 = dma.hbm_to_vmem [thread:$0]  %s1, 256, %s34, [#allocation6], 128, 128, 8
    $region9: #{tpu_custom_call.1} parent=1 // pred_fallthru
      _
    // Predicated region
    $region10: #{tpu_custom_call.1} parent=1 // pred_check
      _
    $region11: #{tpu_custom_call.1} parent=1 // pred_check_branch
      %41 = sbr.rel (0) target = $region13
    $region12: #{tpu_custom_call.1} parent=1 // pred_region
      %s43 = ssub.s32 10240, 10240
      %44 = vsyncadd [#allocation6], %s43
      %s45 = sshll.u32 [#allocation7], 4
      %s46 = int_to_ptr.vmem [resolvable:$true] %s45
      %51 = dma.hbm_to_vmem [thread:$0]  %s2, 10240, %s46, [#allocation6], 320, 320, 20
    $region13: #{tpu_custom_call.1} parent=1 // pred_fallthru
      _
    // Predicated region
    $region14: #{tpu_custom_call.1} parent=1 // pred_check
      _
    $region15: #{tpu_custom_call.1} parent=1 // pred_check_branch
      %53 = sbr.rel (0) target = $region17
    $region16: #{tpu_custom_call.1} parent=1 // pred_region
      _
    $region17: #{tpu_custom_call.1} parent=1 // pred_fallthru
      _
    // Predicated region
    $region18: #{tpu_custom_call.1} parent=1 // pred_check
      _
    $region19: #{tpu_custom_call.1} parent=1 // pred_check_branch
      %55 = sbr.rel (0) target = $region21
    $region20: #{tpu_custom_call.1} parent=1 // pred_region
      %56 = dma.done [#allocation3], 256
    $region21: #{tpu_custom_call.1} parent=1 // pred_fallthru
      _
    // Predicated region
    $region22: #{tpu_custom_call.1} parent=1 // pred_check
      _
    $region23: #{tpu_custom_call.1} parent=1 // pred_check_branch
      %58 = sbr.rel (0) target = $region25
    $region24: #{tpu_custom_call.1} parent=1 // pred_region
      %59 = dma.done [#allocation6], 256
    $region25: #{tpu_custom_call.1} parent=1 // pred_fallthru
      _
    // Predicated region
    $region26: #{tpu_custom_call.1} parent=1 // pred_check
      _
    $region27: #{tpu_custom_call.1} parent=1 // pred_check_branch
      %61 = sbr.rel (0) target = $region29
    $region28: #{tpu_custom_call.1} parent=1 // pred_region
      %62 = dma.done [#allocation6], 10240
    $region29: #{tpu_custom_call.1} parent=1 // pred_fallthru
      _
    %v65 = vld [vmem:[#allocation2] sm:$0xff]
    %v66 = vld [vmem:[#allocation2 + $0x8] sm:$0xff]
    %v67 = vld [vmem:[#allocation7] sm:$0xff]
    %v68 = vld [vmem:[#allocation7 + $0x8] sm:$0xff]
    %v69 = vld [vmem:[#allocation7 + $0x10] sm:$0xf]
    %v70 = vld [vmem:[#allocation7 + $0x14] sm:$0xff]
    %v71 = vld [vmem:[#allocation7 + $0x1c] sm:$0xff]
    %v72 = vld [vmem:[#allocation7 + $0x24] sm:$0xf]
    %v73 = vld [vmem:[#allocation7 + $0x28] sm:$0xff]
    %v74 = vld [vmem:[#allocation7 + $0x30] sm:$0xff]
    %v75 = vld [vmem:[#allocation7 + $0x38] sm:$0xf]
    %v76 = vld [vmem:[#allocation7 + $0x3c] sm:$0xff]
    %v77 = vld [vmem:[#allocation7 + $0x44] sm:$0xff]
    %v78 = vld [vmem:[#allocation7 + $0x4c] sm:$0xf]
    %v79 = vld [vmem:[#allocation7 + $0x50] sm:$0xff]
    %v80 = vld [vmem:[#allocation7 + $0x58] sm:$0xff]
    %v81 = vld [vmem:[#allocation7 + $0x60] sm:$0xf]
    %v82 = vld [vmem:[#allocation7 + $0x64] sm:$0xff]
    %v83 = vld [vmem:[#allocation7 + $0x6c] sm:$0xff]
    %v84 = vld [vmem:[#allocation7 + $0x74] sm:$0xf]
    %v85 = vld [vmem:[#allocation7 + $0x78] sm:$0xff]
    %v86 = vld [vmem:[#allocation7 + $0x80] sm:$0xff]
    %v87 = vld [vmem:[#allocation7 + $0x88] sm:$0xf]
    %v88 = vld [vmem:[#allocation7 + $0x8c] sm:$0xff]
    %v89 = vld [vmem:[#allocation7 + $0x94] sm:$0xff]
    %v90 = vld [vmem:[#allocation7 + $0x9c] sm:$0xf]
    %v91 = vld [vmem:[#allocation7 + $0xa0] sm:$0xff]
    %v92 = vld [vmem:[#allocation7 + $0xa8] sm:$0xff]
    %v93 = vld [vmem:[#allocation7 + $0xb0] sm:$0xf]
    %v94 = vld [vmem:[#allocation7 + $0xb4] sm:$0xff]
    %v95 = vld [vmem:[#allocation7 + $0xbc] sm:$0xff]
    %v96 = vld [vmem:[#allocation7 + $0xc4] sm:$0xf]
    %v97 = vld [vmem:[#allocation7 + $0xc8] sm:$0xff]
    %v98 = vld [vmem:[#allocation7 + $0xd0] sm:$0xff]
    %v99 = vld [vmem:[#allocation7 + $0xd8] sm:$0xf]
    %v100 = vld [vmem:[#allocation7 + $0xdc] sm:$0xff]
    %v101 = vld [vmem:[#allocation7 + $0xe4] sm:$0xff]
    %v102 = vld [vmem:[#allocation7 + $0xec] sm:$0xf]
    %v103 = vld [vmem:[#allocation7 + $0xf0] sm:$0xff]
    %v104 = vld [vmem:[#allocation7 + $0xf8] sm:$0xff]
    %v105 = vld [vmem:[#allocation7 + $0x100] sm:$0xf]
    %v106 = vld [vmem:[#allocation7 + $0x104] sm:$0xff]
    %v107 = vld [vmem:[#allocation7 + $0x10c] sm:$0xff]
    %v108 = vld [vmem:[#allocation7 + $0x114] sm:$0xf]
    %v109 = vld [vmem:[#allocation7 + $0x118] sm:$0xff]
    %v110 = vld [vmem:[#allocation7 + $0x120] sm:$0xff]
    %v111 = vld [vmem:[#allocation7 + $0x128] sm:$0xf]
    %v112 = vld [vmem:[#allocation7 + $0x12c] sm:$0xff]
    %v113 = vld [vmem:[#allocation7 + $0x134] sm:$0xff]
    %v114 = vld [vmem:[#allocation7 + $0x13c] sm:$0xf]
    %v115 = vld [vmem:[#allocation7 + $0x140] sm:$0xff]
    %v116 = vld [vmem:[#allocation7 + $0x148] sm:$0xff]
    %v117 = vld [vmem:[#allocation7 + $0x150] sm:$0xf]
    %v118 = vld [vmem:[#allocation7 + $0x154] sm:$0xff]
    %v119 = vld [vmem:[#allocation7 + $0x15c] sm:$0xff]
    %v120 = vld [vmem:[#allocation7 + $0x164] sm:$0xf]
    %v121 = vld [vmem:[#allocation7 + $0x168] sm:$0xff]
    %v122 = vld [vmem:[#allocation7 + $0x170] sm:$0xff]
    %v123 = vld [vmem:[#allocation7 + $0x178] sm:$0xf]
    %v124 = vld [vmem:[#allocation7 + $0x17c] sm:$0xff]
    %v125 = vld [vmem:[#allocation7 + $0x184] sm:$0xff]
    %v126 = vld [vmem:[#allocation7 + $0x18c] sm:$0xf]
    %v127 = vld [vmem:[#allocation7 + $0x190] sm:$0xff]
    %v128 = vld [vmem:[#allocation7 + $0x198] sm:$0xff]
    %v129 = vld [vmem:[#allocation7 + $0x1a0] sm:$0xf]
    %v130 = vld [vmem:[#allocation7 + $0x1a4] sm:$0xff]
    %v131 = vld [vmem:[#allocation7 + $0x1ac] sm:$0xff]
    %v132 = vld [vmem:[#allocation7 + $0x1b4] sm:$0xf]
    %v133 = vld [vmem:[#allocation7 + $0x1b8] sm:$0xff]
    %v134 = vld [vmem:[#allocation7 + $0x1c0] sm:$0xff]
    %v135 = vld [vmem:[#allocation7 + $0x1c8] sm:$0xf]
    %v136 = vld [vmem:[#allocation7 + $0x1cc] sm:$0xff]
    %v137 = vld [vmem:[#allocation7 + $0x1d4] sm:$0xff]
    %v138 = vld [vmem:[#allocation7 + $0x1dc] sm:$0xf]
    %v139 = vld [vmem:[#allocation7 + $0x1e0] sm:$0xff]
    %v140 = vld [vmem:[#allocation7 + $0x1e8] sm:$0xff]
    %v141 = vld [vmem:[#allocation7 + $0x1f0] sm:$0xf]
    %v142 = vld [vmem:[#allocation7 + $0x1f4] sm:$0xff]
    %v143 = vld [vmem:[#allocation7 + $0x1fc] sm:$0xff]
    %v144 = vld [vmem:[#allocation7 + $0x204] sm:$0xf]
    %v145 = vld [vmem:[#allocation7 + $0x208] sm:$0xff]
    %v146 = vld [vmem:[#allocation7 + $0x210] sm:$0xff]
    %v147 = vld [vmem:[#allocation7 + $0x218] sm:$0xf]
    %v148 = vld [vmem:[#allocation7 + $0x21c] sm:$0xff]
    %v149 = vld [vmem:[#allocation7 + $0x224] sm:$0xff]
    %v150 = vld [vmem:[#allocation7 + $0x22c] sm:$0xf]
    %v151 = vld [vmem:[#allocation7 + $0x230] sm:$0xff]
    %v152 = vld [vmem:[#allocation7 + $0x238] sm:$0xff]
    %v153 = vld [vmem:[#allocation7 + $0x240] sm:$0xf]
    %v154 = vld [vmem:[#allocation7 + $0x244] sm:$0xff]
    %v155 = vld [vmem:[#allocation7 + $0x24c] sm:$0xff]
    %v156 = vld [vmem:[#allocation7 + $0x254] sm:$0xf]
    %v157 = vld [vmem:[#allocation7 + $0x258] sm:$0xff]
    %v158 = vld [vmem:[#allocation7 + $0x260] sm:$0xff]
    %v159 = vld [vmem:[#allocation7 + $0x268] sm:$0xf]
    %v160 = vld [vmem:[#allocation7 + $0x26c] sm:$0xff]
    %v161 = vld [vmem:[#allocation7 + $0x274] sm:$0xff]
    %v162 = vld [vmem:[#allocation7 + $0x27c] sm:$0xf]
    %v163 = vld [vmem:[%s3] sm:$0x1f]
    %v165 = vlaneseq
    %v166 = vshrl.u32 %v165, 7
    %v167 = vsub.s32 0, %v166
    %v168 = vrot.slane %v163, %v167
    %v169 = vlaneseq
    %v170 = vshrl.u32 %v169, 7
    %v171 = vsub.s32 1, %v170
    %v172 = vrot.slane %v163, %v171
    %v173 = vlaneseq
    %v174 = vshrl.u32 %v173, 7
    %v175 = vsub.s32 2, %v174
    %v176 = vrot.slane %v163, %v175
    %v177 = vlaneseq
    %v178 = vshrl.u32 %v177, 7
    %v179 = vsub.s32 3, %v178
    %v180 = vrot.slane %v163, %v179
    %v181 = vlaneseq
    %v182 = vshrl.u32 %v181, 7
    %v183 = vsub.s32 4, %v182
    %v184 = vrot.slane %v163, %v183
    %v192 = vunpack.c.l.b16 %v65
    %v193 = vunpack.c.h.b16 %v65
    %v194 = vunpack.c.l.b16 %v66
    %v195 = vunpack.c.h.b16 %v66
    %v196 = vpack.c.b16 %v194, %v192
    %v197 = vpack.c.b16 %v195, %v193
    %v296 = vunpack.c.l.b16 %v67
    %v297 = vunpack.c.h.b16 %v67
    %v298 = vunpack.c.l.b16 %v68
    %v299 = vunpack.c.h.b16 %v68
    %v300 = vunpack.c.l.b16 %v69
    %v301 = vunpack.c.l.b16 %v70
    %v302 = vunpack.c.h.b16 %v70
    %v303 = vunpack.c.l.b16 %v71
    %v304 = vunpack.c.h.b16 %v71
    %v305 = vunpack.c.l.b16 %v72
    %v306 = vunpack.c.l.b16 %v73
    %v307 = vunpack.c.h.b16 %v73
    %v308 = vunpack.c.l.b16 %v74
    %v309 = vunpack.c.h.b16 %v74
    %v310 = vunpack.c.l.b16 %v75
    %v311 = vunpack.c.l.b16 %v76
    %v312 = vunpack.c.h.b16 %v76
    %v313 = vunpack.c.l.b16 %v77
    %v314 = vunpack.c.h.b16 %v77
    %v315 = vunpack.c.l.b16 %v78
    %v316 = vunpack.c.l.b16 %v79
    %v317 = vunpack.c.h.b16 %v79
    %v318 = vunpack.c.l.b16 %v80
    %v319 = vunpack.c.h.b16 %v80
    %v320 = vunpack.c.l.b16 %v81
    %v321 = vunpack.c.l.b16 %v82
    %v322 = vunpack.c.h.b16 %v82
    %v323 = vunpack.c.l.b16 %v83
    %v324 = vunpack.c.h.b16 %v83
    %v325 = vunpack.c.l.b16 %v84
    %v326 = vunpack.c.l.b16 %v85
    %v327 = vunpack.c.h.b16 %v85
    %v328 = vunpack.c.l.b16 %v86
    %v329 = vunpack.c.h.b16 %v86
    %v330 = vunpack.c.l.b16 %v87
    %v331 = vunpack.c.l.b16 %v88
    %v332 = vunpack.c.h.b16 %v88
    %v333 = vunpack.c.l.b16 %v89
    %v334 = vunpack.c.h.b16 %v89
    %v335 = vunpack.c.l.b16 %v90
    %v336 = vunpack.c.l.b16 %v91
    %v337 = vunpack.c.h.b16 %v91
    %v338 = vunpack.c.l.b16 %v92
    %v339 = vunpack.c.h.b16 %v92
    %v340 = vunpack.c.l.b16 %v93
    %v341 = vunpack.c.l.b16 %v94
    %v342 = vunpack.c.h.b16 %v94
    %v343 = vunpack.c.l.b16 %v95
    %v344 = vunpack.c.h.b16 %v95
    %v345 = vunpack.c.l.b16 %v96
    %v346 = vunpack.c.l.b16 %v97
    %v347 = vunpack.c.h.b16 %v97
    %v348 = vunpack.c.l.b16 %v98
    %v349 = vunpack.c.h.b16 %v98
    %v350 = vunpack.c.l.b16 %v99
    %v351 = vunpack.c.l.b16 %v100
    %v352 = vunpack.c.h.b16 %v100
    %v353 = vunpack.c.l.b16 %v101
    %v354 = vunpack.c.h.b16 %v101
    %v355 = vunpack.c.l.b16 %v102
    %v356 = vunpack.c.l.b16 %v103
    %v357 = vunpack.c.h.b16 %v103
    %v358 = vunpack.c.l.b16 %v104
    %v359 = vunpack.c.h.b16 %v104
    %v360 = vunpack.c.l.b16 %v105
    %v361 = vunpack.c.l.b16 %v106
    %v362 = vunpack.c.h.b16 %v106
    %v363 = vunpack.c.l.b16 %v107
    %v364 = vunpack.c.h.b16 %v107
    %v365 = vunpack.c.l.b16 %v108
    %v366 = vunpack.c.l.b16 %v109
    %v367 = vunpack.c.h.b16 %v109
    %v368 = vunpack.c.l.b16 %v110
    %v369 = vunpack.c.h.b16 %v110
    %v370 = vunpack.c.l.b16 %v111
    %v371 = vunpack.c.l.b16 %v112
    %v372 = vunpack.c.h.b16 %v112
    %v373 = vunpack.c.l.b16 %v113
    %v374 = vunpack.c.h.b16 %v113
    %v375 = vunpack.c.l.b16 %v114
    %v376 = vunpack.c.l.b16 %v115
    %v377 = vunpack.c.h.b16 %v115
    %v378 = vunpack.c.l.b16 %v116
    %v379 = vunpack.c.h.b16 %v116
    %v380 = vunpack.c.l.b16 %v117
    %v381 = vunpack.c.l.b16 %v118
    %v382 = vunpack.c.h.b16 %v118
    %v383 = vunpack.c.l.b16 %v119
    %v384 = vunpack.c.h.b16 %v119
    %v385 = vunpack.c.l.b16 %v120
    %v386 = vunpack.c.l.b16 %v121
    %v387 = vunpack.c.h.b16 %v121
    %v388 = vunpack.c.l.b16 %v122
    %v389 = vunpack.c.h.b16 %v122
    %v390 = vunpack.c.l.b16 %v123
    %v391 = vunpack.c.l.b16 %v124
    %v392 = vunpack.c.h.b16 %v124
    %v393 = vunpack.c.l.b16 %v125
    %v394 = vunpack.c.h.b16 %v125
    %v395 = vunpack.c.l.b16 %v126
    %v396 = vunpack.c.l.b16 %v127
    %v397 = vunpack.c.h.b16 %v127
    %v398 = vunpack.c.l.b16 %v128
    %v399 = vunpack.c.h.b16 %v128
    %v400 = vunpack.c.l.b16 %v129
    %v401 = vunpack.c.l.b16 %v130
    %v402 = vunpack.c.h.b16 %v130
    %v403 = vunpack.c.l.b16 %v131
    %v404 = vunpack.c.h.b16 %v131
    %v405 = vunpack.c.l.b16 %v132
    %v406 = vunpack.c.l.b16 %v133
    %v407 = vunpack.c.h.b16 %v133
    %v408 = vunpack.c.l.b16 %v134
    %v409 = vunpack.c.h.b16 %v134
    %v410 = vunpack.c.l.b16 %v135
    %v411 = vunpack.c.l.b16 %v136
    %v412 = vunpack.c.h.b16 %v136
    %v413 = vunpack.c.l.b16 %v137
    %v414 = vunpack.c.h.b16 %v137
    %v415 = vunpack.c.l.b16 %v138
    %v416 = vunpack.c.l.b16 %v139
    %v417 = vunpack.c.h.b16 %v139
    %v418 = vunpack.c.l.b16 %v140
    %v419 = vunpack.c.h.b16 %v140
    %v420 = vunpack.c.l.b16 %v141
    %v421 = vunpack.c.l.b16 %v142
    %v422 = vunpack.c.h.b16 %v142
    %v423 = vunpack.c.l.b16 %v143
    %v424 = vunpack.c.h.b16 %v143
    %v425 = vunpack.c.l.b16 %v144
    %v426 = vunpack.c.l.b16 %v145
    %v427 = vunpack.c.h.b16 %v145
    %v428 = vunpack.c.l.b16 %v146
    %v429 = vunpack.c.h.b16 %v146
    %v430 = vunpack.c.l.b16 %v147
    %v431 = vunpack.c.l.b16 %v148
    %v432 = vunpack.c.h.b16 %v148
    %v433 = vunpack.c.l.b16 %v149
    %v434 = vunpack.c.h.b16 %v149
    %v435 = vunpack.c.l.b16 %v150
    %v436 = vunpack.c.l.b16 %v151
    %v437 = vunpack.c.h.b16 %v151
    %v438 = vunpack.c.l.b16 %v152
    %v439 = vunpack.c.h.b16 %v152
    %v440 = vunpack.c.l.b16 %v153
    %v441 = vunpack.c.l.b16 %v154
    %v442 = vunpack.c.h.b16 %v154
    %v443 = vunpack.c.l.b16 %v155
    %v444 = vunpack.c.h.b16 %v155
    %v445 = vunpack.c.l.b16 %v156
    %v446 = vunpack.c.l.b16 %v157
    %v447 = vunpack.c.h.b16 %v157
    %v448 = vunpack.c.l.b16 %v158
    %v449 = vunpack.c.h.b16 %v158
    %v450 = vunpack.c.l.b16 %v159
    %v451 = vunpack.c.l.b16 %v160
    %v452 = vunpack.c.h.b16 %v160
    %v453 = vunpack.c.l.b16 %v161
    %v454 = vunpack.c.h.b16 %v161
    %v455 = vunpack.c.l.b16 %v162
    %v456 = vpack.c.b16 %v301, %v296
    %v457 = vpack.c.b16 %v302, %v297
    %v458 = vpack.c.b16 %v303, %v298
    %v459 = vpack.c.b16 %v304, %v299
    %v460 = vpack.c.b16 %v305, %v300
    %v461 = vpack.c.b16 %v311, %v306
    %v462 = vpack.c.b16 %v312, %v307
    %v463 = vpack.c.b16 %v313, %v308
    %v464 = vpack.c.b16 %v314, %v309
    %v465 = vpack.c.b16 %v315, %v310
    %v466 = vpack.c.b16 %v321, %v316
    %v467 = vpack.c.b16 %v322, %v317
    %v468 = vpack.c.b16 %v323, %v318
    %v469 = vpack.c.b16 %v324, %v319
    %v470 = vpack.c.b16 %v325, %v320
    %v471 = vpack.c.b16 %v331, %v326
    %v472 = vpack.c.b16 %v332, %v327
    %v473 = vpack.c.b16 %v333, %v328
    %v474 = vpack.c.b16 %v334, %v329
    %v475 = vpack.c.b16 %v335, %v330
    %v476 = vpack.c.b16 %v341, %v336
    %v477 = vpack.c.b16 %v342, %v337
    %v478 = vpack.c.b16 %v343, %v338
    %v479 = vpack.c.b16 %v344, %v339
    %v480 = vpack.c.b16 %v345, %v340
    %v481 = vpack.c.b16 %v351, %v346
    %v482 = vpack.c.b16 %v352, %v347
    %v483 = vpack.c.b16 %v353, %v348
    %v484 = vpack.c.b16 %v354, %v349
    %v485 = vpack.c.b16 %v355, %v350
    %v486 = vpack.c.b16 %v361, %v356
    %v487 = vpack.c.b16 %v362, %v357
    %v488 = vpack.c.b16 %v363, %v358
    %v489 = vpack.c.b16 %v364, %v359
    %v490 = vpack.c.b16 %v365, %v360
    %v491 = vpack.c.b16 %v371, %v366
    %v492 = vpack.c.b16 %v372, %v367
    %v493 = vpack.c.b16 %v373, %v368
    %v494 = vpack.c.b16 %v374, %v369
    %v495 = vpack.c.b16 %v375, %v370
    %v496 = vpack.c.b16 %v381, %v376
    %v497 = vpack.c.b16 %v382, %v377
    %v498 = vpack.c.b16 %v383, %v378
    %v499 = vpack.c.b16 %v384, %v379
    %v500 = vpack.c.b16 %v385, %v380
    %v501 = vpack.c.b16 %v391, %v386
    %v502 = vpack.c.b16 %v392, %v387
    %v503 = vpack.c.b16 %v393, %v388
    %v504 = vpack.c.b16 %v394, %v389
    %v505 = vpack.c.b16 %v395, %v390
    %v506 = vpack.c.b16 %v401, %v396
    %v507 = vpack.c.b16 %v402, %v397
    %v508 = vpack.c.b16 %v403, %v398
    %v509 = vpack.c.b16 %v404, %v399
    %v510 = vpack.c.b16 %v405, %v400
    %v511 = vpack.c.b16 %v411, %v406
    %v512 = vpack.c.b16 %v412, %v407
    %v513 = vpack.c.b16 %v413, %v408
    %v514 = vpack.c.b16 %v414, %v409
    %v515 = vpack.c.b16 %v415, %v410
    %v516 = vpack.c.b16 %v421, %v416
    %v517 = vpack.c.b16 %v422, %v417
    %v518 = vpack.c.b16 %v423, %v418
    %v519 = vpack.c.b16 %v424, %v419
    %v520 = vpack.c.b16 %v425, %v420
    %v521 = vpack.c.b16 %v431, %v426
    %v522 = vpack.c.b16 %v432, %v427
    %v523 = vpack.c.b16 %v433, %v428
    %v524 = vpack.c.b16 %v434, %v429
    %v525 = vpack.c.b16 %v435, %v430
    %v526 = vpack.c.b16 %v441, %v436
    %v527 = vpack.c.b16 %v442, %v437
    %v528 = vpack.c.b16 %v443, %v438
    %v529 = vpack.c.b16 %v444, %v439
    %v530 = vpack.c.b16 %v445, %v440
    %v531 = vpack.c.b16 %v451, %v446
    %v532 = vpack.c.b16 %v452, %v447
    %v533 = vpack.c.b16 %v453, %v448
    %v534 = vpack.c.b16 %v454, %v449
    %v535 = vpack.c.b16 %v455, %v450
    %616 = vmatprep.subr.bf16.mxu0 %v492
    %617 = vmatpush1.bf16.msra.mxu0 %v491
    %618 = vmatprep.subr.bf16.mxu0 %v487
    %619 = vmatpush1.bf16.msra.mxu0 %v486
    %620 = vmatprep.subr.bf16.mxu0 %v482
    %621 = vmatpush1.bf16.msra.mxu0 %v481
    %622 = vmatprep.subr.bf16.mxu0 %v477
    %623 = vmatpush1.bf16.msra.mxu0 %v476
    %624 = vmatprep.subr.bf16.mxu0 %v472
    %625 = vmatpush1.bf16.msra.mxu0 %v471
    %626 = vmatprep.subr.bf16.mxu0 %v467
    %627 = vmatpush1.bf16.msra.mxu0 %v466
    %628 = vmatprep.subr.bf16.mxu0 %v462
    %629 = vmatpush1.bf16.msra.mxu0 %v461
    %630 = vmatprep.subr.bf16.mxu0 %v457
    %631 = vmatpush1.bf16.msra.mxu0 %v456
    %632 = vmatprep.subr.bf16.mxu0 %v532
    %633 = vmatpush2.bf16.msra.mxu0 %v531
    %634 = vmatprep.subr.bf16.mxu0 %v527
    %635 = vmatpush2.bf16.msra.mxu0 %v526
    %636 = vmatprep.subr.bf16.mxu0 %v522
    %637 = vmatpush2.bf16.msra.mxu0 %v521
    %638 = vmatprep.subr.bf16.mxu0 %v517
    %639 = vmatpush2.bf16.msra.mxu0 %v516
    %640 = vmatprep.subr.bf16.mxu0 %v512
    %641 = vmatpush2.bf16.msra.mxu0 %v511
    %642 = vmatprep.subr.bf16.mxu0 %v507
    %643 = vmatpush2.bf16.msra.mxu0 %v506
    %644 = vmatprep.subr.bf16.mxu0 %v502
    %645 = vmatpush2.bf16.msra.mxu0 %v501
    %646 = vmatprep.subr.bf16.mxu0 %v497
    %647 = vmatpush2.bf16.msra.mxu0 %v496
    %648 = vmatprep.mubr.bf16.mxu0 %v197
    %649 = vmatmul.mubr.bf16.gmra.mxu0 %v196
    %v650 = vpop.f32.mrf.mxu0
    %v651 = vadd.f32 %v168, %v650
    %v652 = vpop.f32.mrf.mxu0
    %v653 = vadd.f32 %v172, %v652
    %v654 = vpop.f32.mrf.mxu0
    %v655 = vadd.f32 %v168, %v654
    %v656 = vpop.f32.mrf.mxu0
    %v657 = vadd.f32 %v172, %v656
    %658 = vdwg.mxu0
    %659 = vmatprep.subr.bf16.mxu0 %v494
    %660 = vmatpush1.bf16.msra.mxu0 %v493
    %661 = vmatprep.subr.bf16.mxu0 %v489
    %662 = vmatpush1.bf16.msra.mxu0 %v488
    %663 = vmatprep.subr.bf16.mxu0 %v484
    %664 = vmatpush1.bf16.msra.mxu0 %v483
    %665 = vmatprep.subr.bf16.mxu0 %v479
    %666 = vmatpush1.bf16.msra.mxu0 %v478
    %667 = vmatprep.subr.bf16.mxu0 %v474
    %668 = vmatpush1.bf16.msra.mxu0 %v473
    %669 = vmatprep.subr.bf16.mxu0 %v469
    %670 = vmatpush1.bf16.msra.mxu0 %v468
    %671 = vmatprep.subr.bf16.mxu0 %v464
    %672 = vmatpush1.bf16.msra.mxu0 %v463
    %673 = vmatprep.subr.bf16.mxu0 %v459
    %674 = vmatpush1.bf16.msra.mxu0 %v458
    %675 = vmatprep.subr.bf16.mxu0 %v534
    %676 = vmatpush2.bf16.msra.mxu0 %v533
    %677 = vmatprep.subr.bf16.mxu0 %v529
    %678 = vmatpush2.bf16.msra.mxu0 %v528
    %679 = vmatprep.subr.bf16.mxu0 %v524
    %680 = vmatpush2.bf16.msra.mxu0 %v523
    %681 = vmatprep.subr.bf16.mxu0 %v519
    %682 = vmatpush2.bf16.msra.mxu0 %v518
    %683 = vmatprep.subr.bf16.mxu0 %v514
    %684 = vmatpush2.bf16.msra.mxu0 %v513
    %685 = vmatprep.subr.bf16.mxu0 %v509
    %686 = vmatpush2.bf16.msra.mxu0 %v508
    %687 = vmatprep.subr.bf16.mxu0 %v504
    %688 = vmatpush2.bf16.msra.mxu0 %v503
    %689 = vmatprep.subr.bf16.mxu0 %v499
    %690 = vmatpush2.bf16.msra.mxu0 %v498
    %691 = vmatprep.mubr.bf16.mxu0 %v197
    %692 = vmatmul.mubr.bf16.gmra.mxu0 %v196
    %v693 = vpop.f32.mrf.mxu0
    %v694 = vadd.f32 %v176, %v693
    %v695 = vpop.f32.mrf.mxu0
    %v696 = vadd.f32 %v180, %v695
    %v697 = vpop.f32.mrf.mxu0
    %v698 = vadd.f32 %v176, %v697
    %v699 = vpop.f32.mrf.mxu0
    %v700 = vadd.f32 %v180, %v699
    %701 = vdwg.mxu0
    %702 = vmatprep.subr.bf16.mxu0 0
    %703 = vmatpush1.bf16.msra.mxu0 %v495
    %704 = vmatprep.subr.bf16.mxu0 0
    %705 = vmatpush1.bf16.msra.mxu0 %v490
    %706 = vmatprep.subr.bf16.mxu0 0
    %707 = vmatpush1.bf16.msra.mxu0 %v485
    %708 = vmatprep.subr.bf16.mxu0 0
    %709 = vmatpush1.bf16.msra.mxu0 %v480
    %710 = vmatprep.subr.bf16.mxu0 0
    %711 = vmatpush1.bf16.msra.mxu0 %v475
    %712 = vmatprep.subr.bf16.mxu0 0
    %713 = vmatpush1.bf16.msra.mxu0 %v470
    %714 = vmatprep.subr.bf16.mxu0 0
    %715 = vmatpush1.bf16.msra.mxu0 %v465
    %716 = vmatprep.subr.bf16.mxu0 0
    %717 = vmatpush1.bf16.msra.mxu0 %v460
    %718 = vmatprep.subr.bf16.mxu0 0
    %719 = vmatpush2.bf16.msra.mxu0 %v535
    %720 = vmatprep.subr.bf16.mxu0 0
    %721 = vmatpush2.bf16.msra.mxu0 %v530
    %722 = vmatprep.subr.bf16.mxu0 0
    %723 = vmatpush2.bf16.msra.mxu0 %v525
    %724 = vmatprep.subr.bf16.mxu0 0
    %725 = vmatpush2.bf16.msra.mxu0 %v520
    %726 = vmatprep.subr.bf16.mxu0 0
    %727 = vmatpush2.bf16.msra.mxu0 %v515
    %728 = vmatprep.subr.bf16.mxu0 0
    %729 = vmatpush2.bf16.msra.mxu0 %v510
    %730 = vmatprep.subr.bf16.mxu0 0
    %731 = vmatpush2.bf16.msra.mxu0 %v505
    %732 = vmatprep.subr.bf16.mxu0 0
    %733 = vmatpush2.bf16.msra.mxu0 %v500
    %734 = vmatprep.mubr.bf16.mxu0 %v197
    %735 = vmatmul.mubr.bf16.gmra.mxu0 %v196
    %v736 = vpop.f32.mrf.mxu0
    %v737 = vadd.f32 %v184, %v736
    %v738 = vpop.f32.mrf.mxu0
    %v739 = vpop.f32.mrf.mxu0
    %v740 = vadd.f32 %v184, %v739
    %v741 = vpop.f32.mrf.mxu0
    %742 = vdwg.mxu0
    %v743 = vpack.c.bf16 %v655, %v651
    %v744 = vpack.c.bf16 %v657, %v653
    %v745 = vpack.c.bf16 %v698, %v694
    %v746 = vpack.c.bf16 %v700, %v696
    %v747 = vpack.c.bf16 %v740, %v737
    %v748 = vmul.bf16 %v743, 1056980736
    %v749 = vtanh.bf16.pop %v748
    %v750 = vmul.bf16 %v749, 1056980736
    %v751 = vadd.bf16 %v750, 1056980736
    %v752 = vunpack.c.l.bf16 %v751
    %v753 = vunpack.c.h.bf16 %v751
    %v754 = vmul.bf16 %v744, 1056980736
    %v755 = vtanh.bf16.pop %v754
    %v756 = vmul.bf16 %v755, 1056980736
    %v757 = vadd.bf16 %v756, 1056980736
    %v758 = vunpack.c.l.bf16 %v757
    %v759 = vunpack.c.h.bf16 %v757
    %v760 = vtanh.bf16.pop %v745
    %v761 = vunpack.c.l.bf16 %v760
    %v762 = vunpack.c.h.bf16 %v760
    %v763 = vmul.bf16 %v746, 1056980736
    %v764 = vtanh.bf16.pop %v763
    %v765 = vmul.bf16 %v764, 1056980736
    %v766 = vadd.bf16 %v765, 1056980736
    %v767 = vmul.bf16 %v747, 1056980736
    %v768 = vtanh.bf16.pop %v767
    %v769 = vmul.bf16 %v768, 1056980736
    %v770 = vadd.bf16 %v769, 1056980736
    %v771 = vld [vmem:[#allocation5] sm:$0xff]
    %v772 = vld [vmem:[#allocation5 + $0x8] sm:$0xff]
    %v773 = vmul.f32 %v758, %v771
    %v774 = vmul.f32 %v759, %v772
    %v775 = vmul.f32 %v752, %v761
    %v776 = vmul.f32 %v753, %v762
    %v777 = vadd.f32 %v773, %v775
    %v778 = vadd.f32 %v774, %v776
    %v779 = vpack.c.bf16 %v778, %v777
    %v780 = vtanh.bf16.pop %v779
    %v781 = vmul.bf16 %v766, %v780
    %v783 = vunpack.c.l.b16 %v781
    %v784 = vunpack.c.h.b16 %v781
    %v785 = vpack.c.b16 %v783, %v783
    %v786 = vpack.c.b16 %v784, %v784
    %789 = vst [vmem:[#allocation8] sm:$0xf] %v785
    %790 = vst [vmem:[#allocation8 + $0x4] sm:$0xf] %v786
    %791 = vst [vmem:[#allocation9] sm:$0xff] %v777
    %792 = vst [vmem:[#allocation9 + $0x8] sm:$0xff] %v778
    %v793 = vmul.bf16 %v770, %v780
    %v795 = vunpack.c.l.b16 %v793
    %v796 = vunpack.c.h.b16 %v793
    %v797 = vpack.c.b16 %v795, %v795
    %v798 = vpack.c.b16 %v796, %v796
    %801 = vst [vmem:[#allocation11] sm:$0xf] %v797
    %802 = vst [vmem:[#allocation11 + $0x4] sm:$0xf] %v798
    // Predicated region
    $region30: #{tpu_custom_call.1} parent=1 // pred_check
      _
    $region31: #{tpu_custom_call.1} parent=1 // pred_check_branch
      %804 = sbr.rel (0) target = $region33
    $region32: #{tpu_custom_call.1} parent=1 // pred_region
      %s806 = ssub.s32 128, 128
      %807 = vsyncadd [#allocation4], %s806
      %s808 = sshll.u32 [#allocation8], 4
      %s809 = int_to_ptr.vmem [resolvable:$true] %s808
      %814 = dma.vmem_to_hbm [thread:$0]  %s809, 128, %s4, [#allocation4], 64, 64, 4
    $region33: #{tpu_custom_call.1} parent=1 // pred_fallthru
      _
    // Predicated region
    $region34: #{tpu_custom_call.1} parent=1 // pred_check
      _
    $region35: #{tpu_custom_call.1} parent=1 // pred_check_branch
      %816 = sbr.rel (0) target = $region37
    $region36: #{tpu_custom_call.1} parent=1 // pred_region
      %s818 = ssub.s32 256, 256
      %819 = vsyncadd [#allocation10], %s818
      %s820 = sshll.u32 [#allocation9], 4
      %s821 = int_to_ptr.vmem [resolvable:$true] %s820
      %826 = dma.vmem_to_hbm [thread:$0]  %s821, 256, %s5, [#allocation10], 128, 128, 8
    $region37: #{tpu_custom_call.1} parent=1 // pred_fallthru
      _
    // Predicated region
    $region38: #{tpu_custom_call.1} parent=1 // pred_check
      _
    $region39: #{tpu_custom_call.1} parent=1 // pred_check_branch
      %828 = sbr.rel (0) target = $region41
    $region40: #{tpu_custom_call.1} parent=1 // pred_region
      %s830 = ssub.s32 128, 128
      %831 = vsyncadd [#allocation10], %s830
      %s832 = sshll.u32 [#allocation11], 4
      %s833 = int_to_ptr.vmem [resolvable:$true] %s832
      %838 = dma.vmem_to_hbm [thread:$0]  %s833, 128, %s6, [#allocation10], 64, 64, 4
    $region41: #{tpu_custom_call.1} parent=1 // pred_fallthru
      _
    // Predicated region
    $region42: #{tpu_custom_call.1} parent=1 // pred_check
      _
    $region43: #{tpu_custom_call.1} parent=1 // pred_check_branch
      %840 = sbr.rel (0) target = $region45
    $region44: #{tpu_custom_call.1} parent=1 // pred_region
      %841 = dma.done [#allocation4], 128
    $region45: #{tpu_custom_call.1} parent=1 // pred_fallthru
      _
    // Predicated region
    $region46: #{tpu_custom_call.1} parent=1 // pred_check
      _
    $region47: #{tpu_custom_call.1} parent=1 // pred_check_branch
      %843 = sbr.rel (0) target = $region49
    $region48: #{tpu_custom_call.1} parent=1 // pred_region
      %844 = dma.done [#allocation10], 256
    $region49: #{tpu_custom_call.1} parent=1 // pred_fallthru
      _
    // Predicated region
    $region50: #{tpu_custom_call.1} parent=1 // pred_check
      _
    $region51: #{tpu_custom_call.1} parent=1 // pred_check_branch
      %846 = sbr.rel (0) target = $region53
    $region52: #{tpu_custom_call.1} parent=1 // pred_region
      %847 = dma.done [#allocation10], 128
    $region53: #{tpu_custom_call.1} parent=1 // pred_fallthru
      _
    %848 = vsyncpa [#allocation3], 1
    %849 = vsyncpa [#allocation6], 1
    %850 = vsyncpa [#allocation4], 1
    %851 = vsyncpa [#allocation10], 1

</llo_original>
